<compile_context>
chip_gen: v7x
topology: tpu7x:2x2x1
jax: 0.10.0
libtpu: 0.0.40
codegen_flags: <defaults>
</compile_context>

<pallas_src>
import math
import functools

import jax
import jax.numpy as jnp
from jax.experimental import pallas as pl
from jax.experimental.pallas import tpu as pltpu


def _mhsa_kernel(x_ref, wqkv_ref, bqkv_ref, wf_ref, bf_ref, o_ref,
                 *, num_heads, head_dim, embed_dim, block_b, seq_len, e_pad):
    H, D, E, bt, S = num_heads, head_dim, embed_dim, block_b, seq_len
    rows = bt * S

    x = x_ref[...]                          # (bt, S, e_pad) f32, pad columns are zero
    x2d = x.reshape(rows, e_pad)
    x_bf = x2d.astype(jnp.bfloat16)

    # ---- Fused Q|K|V projection: one wide bf16 MXU matmul, f32 accumulate, f32 bias.
    qkv = jnp.dot(x_bf, wqkv_ref[...], preferred_element_type=jnp.float32)
    qkv = qkv + bqkv_ref[...]               # (rows, 3*e_pad)

    # Real (un-padded) Q/K/V columns; each chunk starts on a 128-aligned lane offset.
    q = qkv[:, 0 * e_pad:0 * e_pad + E].reshape(bt, S, E)
    k = qkv[:, 1 * e_pad:1 * e_pad + E].reshape(bt, S, E)
    v = qkv[:, 2 * e_pad:2 * e_pad + E].reshape(bt, S, E)

    # ---- Move heads to a leading batch axis: (bt, S, E) -> (H*bt, S, D), head-major.
    def split_heads(t):
        return jnp.concatenate([t[:, :, h * D:(h + 1) * D] for h in range(H)], axis=0)

    scale = 1.0 / math.sqrt(float(D))
    qh = (split_heads(q) * scale).astype(jnp.bfloat16)
    kh = split_heads(k).astype(jnp.bfloat16)
    vh = split_heads(v).astype(jnp.bfloat16)

    # ---- Single batched contraction for scores and weighted values (no per-head matmuls).
    s = jnp.einsum('bqd,bkd->bqk', qh, kh, preferred_element_type=jnp.float32)
    s = s - jnp.max(s, axis=-1, keepdims=True)            # f32 softmax
    p = jnp.exp(s)
    p = p * pl.reciprocal(jnp.sum(p, axis=-1, keepdims=True), approx=True)
    att = jnp.einsum('bqk,bkd->bqd', p.astype(jnp.bfloat16), vh,
                     preferred_element_type=jnp.float32)   # (H*bt, S, D)

    # ---- Back to (rows, E): undo the head-major batch split.
    att = jnp.concatenate([att[h * bt:(h + 1) * bt] for h in range(H)], axis=-1)
    att2d = att.reshape(rows, E)

    # ---- Output projection (bf16 MXU, f32 acc) + f32 bias + f32 residual.
    y = jnp.dot(att2d.astype(jnp.bfloat16), wf_ref[...],
                preferred_element_type=jnp.float32)
    y = y + bf_ref[...] + x2d                              # (rows, e_pad); pad cols stay 0

    partial = jnp.sum(y.reshape(bt, S, e_pad), axis=0)     # batch-sum of this block

    @pl.when(pl.program_id(0) == 0)
    def _():
        o_ref[...] = jnp.zeros_like(o_ref)

    o_ref[...] += partial


def mhsa_pallas(x, params, *, num_heads, block_b=None):
    B, S, E = x.shape
    D = E // num_heads
    assert num_heads * D == E

    wq, bq, wk, bk, wv, bv, wf, bf = params

    # Lane-dense padded embed dim (multiple of 128).
    e_pad = ((max(E, 128) + 127) // 128) * 128
    pe = e_pad - E

    # Process several batch elements per grid step to amortize the ~0.35us/step overhead.
    if block_b is None:
        block_b = 1
        for cand in range(min(B, 8), 0, -1):
            if B % cand == 0:
                block_b = cand
                break
    assert B % block_b == 0
    n_blocks = B // block_b

    # PyTorch Linear stores (out, in): pre-transpose so the kernel computes x @ W + b.
    def pad_qkv_w(w):                                     # (E, E) -> (e_pad, e_pad)
        return jnp.pad(w.T.astype(jnp.float32), ((0, pe), (0, pe)))

    wqkv = jnp.concatenate([pad_qkv_w(wq), pad_qkv_w(wk), pad_qkv_w(wv)],
                           axis=1).astype(jnp.bfloat16)   # (e_pad, 3*e_pad) bf16
    bqkv = jnp.concatenate([jnp.pad(b.astype(jnp.float32), (0, pe))
                            for b in (bq, bk, bv)]).reshape(1, 3 * e_pad)
    wf_p = jnp.pad(wf.T.astype(jnp.float32),
                   ((0, 0), (0, pe))).astype(jnp.bfloat16)            # (E, e_pad) bf16
    bf_p = jnp.pad(bf.astype(jnp.float32), (0, pe)).reshape(1, e_pad)

    x_p = jnp.pad(x.astype(jnp.float32), ((0, 0), (0, 0), (0, pe)))   # (B, S, e_pad)

    kernel = functools.partial(
        _mhsa_kernel, num_heads=num_heads, head_dim=D, embed_dim=E,
        block_b=block_b, seq_len=S, e_pad=e_pad)

    out = pl.pallas_call(
        kernel,
        out_shape=jax.ShapeDtypeStruct((S, e_pad), jnp.float32),
        grid_spec=pltpu.PrefetchScalarGridSpec(
            num_scalar_prefetch=0,
            grid=(n_blocks,),
            in_specs=[
                pl.BlockSpec((block_b, S, e_pad), lambda i: (i, 0, 0)),   # x batch block
                pl.BlockSpec((e_pad, 3 * e_pad), lambda i: (0, 0)),       # fused W_qkv
                pl.BlockSpec((1, 3 * e_pad), lambda i: (0, 0)),           # fused b_qkv
                pl.BlockSpec((E, e_pad), lambda i: (0, 0)),               # W_fc
                pl.BlockSpec((1, e_pad), lambda i: (0, 0)),               # b_fc
            ],
            out_specs=pl.BlockSpec((S, e_pad), lambda i: (0, 0)),         # batch-sum acc
        ),
        compiler_params=pltpu.CompilerParams(
            dimension_semantics=("arbitrary",),   # output accumulates across batch blocks
        ),
    )(x_p, wqkv, bqkv, wf_p, bf_p)

    out = out[:, :E]
    if B == 1:
        # torch.squeeze drops the size-1 batch dim, so torch.sum(dim=0) runs over seq.
        out = jnp.sum(out, axis=0)
    return out


def mhsa_reference(x, params, *, num_heads):
    """Pure-JAX f32 reference mirroring the PyTorch forward."""
    B, S, E = x.shape
    D = E // num_heads
    wq, bq, wk, bk, wv, bv, wf, bf = params

    def lin(a, w, b):
        return a @ w.T + b

    q = lin(x, wq, bq).reshape(B, S, num_heads, D).transpose(0, 2, 1, 3)
    k = lin(x, wk, bk).reshape(B, S, num_heads, D).transpose(0, 2, 1, 3)
    v = lin(x, wv, bv).reshape(B, S, num_heads, D).transpose(0, 2, 1, 3)
    attn = jnp.einsum("bhqd,bhkd->bhqk", q, k) / jnp.sqrt(jnp.float32(D))
    attn = jax.nn.softmax(attn, axis=-1)
    att = jnp.einsum("bhqk,bhkd->bhqd", attn, v).transpose(0, 2, 1, 3).reshape(B, S, E)
    y = lin(att, wf, bf) + x
    y = jnp.squeeze(y)
    return jnp.sum(y, axis=0)


if __name__ == "__main__":
    B, S, E, H = 2, 8, 32, 4

    key = jax.random.PRNGKey(0)
    keys = jax.random.split(key, 9)
    x = jax.random.normal(keys[0], (B, S, E), dtype=jnp.float32)

    scale = 1.0 / math.sqrt(E)
    params = (
        jax.random.uniform(keys[1], (E, E), jnp.float32, -scale, scale),  # wq
        jax.random.uniform(keys[2], (E,),  jnp.float32, -scale, scale),   # bq
        jax.random.uniform(keys[3], (E, E), jnp.float32, -scale, scale),  # wk
        jax.random.uniform(keys[4], (E,),  jnp.float32, -scale, scale),   # bk
        jax.random.uniform(keys[5], (E, E), jnp.float32, -scale, scale),  # wv
        jax.random.uniform(keys[6], (E,),  jnp.float32, -scale, scale),   # bv
        jax.random.uniform(keys[7], (E, E), jnp.float32, -scale, scale),  # wf
        jax.random.uniform(keys[8], (E,),  jnp.float32, -scale, scale),   # bf
    )

    out = jax.block_until_ready(mhsa_pallas(x, params, num_heads=H))
    ref = mhsa_reference(x, params, num_heads=H)

    assert out.shape == (S, E)
    # bf16 MXU inputs vs. f32 reference -> slightly relaxed tolerance.
    assert jnp.allclose(out, ref, atol=5e-2, rtol=5e-2), "mismatch vs reference"

    print("KERNEL_OK")
</pallas_src>

<mosaic_0001>
module attributes {stable_mosaic.version = 11 : i64} {
  func.func @_mhsa_kernel(%arg0: i32, %arg1: memref<2x8x128xf32, #tpu.memory_space<vmem>>, %arg2: memref<128x384xbf16, #tpu.memory_space<vmem>>, %arg3: memref<1x384xf32, #tpu.memory_space<vmem>>, %arg4: memref<32x128xbf16, #tpu.memory_space<vmem>>, %arg5: memref<1x128xf32, #tpu.memory_space<vmem>>, %arg6: memref<8x128xf32, #tpu.memory_space<vmem>>) attributes {dimension_semantics = [#tpu.dimension_semantics<arbitrary>], iteration_bounds = array<i64: 1>, scalar_prefetch = 0 : i64, scratch_operands = 0 : i64, tpu.core_type = #tpu.core_type<tc>, window_params = [{transform_indices = @transform_0, window_bounds = array<i64: 2, 8, 128>}, {pipeline_mode = #tpu.pipeline_mode<synchronous>, transform_indices = @transform_1, window_bounds = array<i64: 128, 384>}, {pipeline_mode = #tpu.pipeline_mode<synchronous>, transform_indices = @transform_2, window_bounds = array<i64: 1, 384>}, {pipeline_mode = #tpu.pipeline_mode<synchronous>, transform_indices = @transform_3, window_bounds = array<i64: 32, 128>}, {pipeline_mode = #tpu.pipeline_mode<synchronous>, transform_indices = @transform_4, window_bounds = array<i64: 1, 128>}, {pipeline_mode = #tpu.pipeline_mode<synchronous>, transform_indices = @transform_5, window_bounds = array<i64: 8, 128>}]} {
    %c0 = arith.constant 0 : index
    %c0_0 = arith.constant 0 : index
    %c0_1 = arith.constant 0 : index
    %0 = vector.load %arg1[%c0, %c0_0, %c0_1] : memref<2x8x128xf32, #tpu.memory_space<vmem>>, vector<2x8x128xf32>
    %1 = vector.shape_cast %0 : vector<2x8x128xf32> to vector<16x128xf32>
    %2 = arith.truncf %1 : vector<16x128xf32> to vector<16x128xbf16>
    %c0_2 = arith.constant 0 : index
    %c0_3 = arith.constant 0 : index
    %3 = vector.load %arg2[%c0_2, %c0_3] : memref<128x384xbf16, #tpu.memory_space<vmem>>, vector<128x384xbf16>
    %cst = arith.constant dense<0.000000e+00> : vector<16x384xf32>
    %4 = tpu.matmul %2, %3, %cst {dimension_numbers = #tpu.dot_dimension_numbers<[1], [0], [0], [1], [0, 0, 1, 1], [], []>} : vector<16x128xbf16>, vector<128x384xbf16>, vector<16x384xf32> -> vector<16x384xf32>
    %c0_4 = arith.constant 0 : index
    %c0_5 = arith.constant 0 : index
    %5 = vector.load %arg3[%c0_4, %c0_5] : memref<1x384xf32, #tpu.memory_space<vmem>>, vector<1x384xf32>
    %6 = vector.broadcast %5 : vector<1x384xf32> to vector<16x384xf32>
    %7 = arith.addf %4, %6 : vector<16x384xf32>
    %8 = vector.extract_strided_slice %7 {offsets = [0, 0], sizes = [16, 32], strides = [1, 1]} : vector<16x384xf32> to vector<16x32xf32>
    %9 = vector.shape_cast %8 : vector<16x32xf32> to vector<2x8x32xf32>
    %10 = vector.extract_strided_slice %7 {offsets = [0, 128], sizes = [16, 32], strides = [1, 1]} : vector<16x384xf32> to vector<16x32xf32>
    %11 = vector.shape_cast %10 : vector<16x32xf32> to vector<2x8x32xf32>
    %12 = vector.extract_strided_slice %7 {offsets = [0, 256], sizes = [16, 32], strides = [1, 1]} : vector<16x384xf32> to vector<16x32xf32>
    %13 = vector.shape_cast %12 : vector<16x32xf32> to vector<2x8x32xf32>
    %14 = vector.extract_strided_slice %9 {offsets = [0, 0, 0], sizes = [2, 8, 8], strides = [1, 1, 1]} : vector<2x8x32xf32> to vector<2x8x8xf32>
    %15 = vector.extract_strided_slice %9 {offsets = [0, 0, 8], sizes = [2, 8, 8], strides = [1, 1, 1]} : vector<2x8x32xf32> to vector<2x8x8xf32>
    %16 = vector.extract_strided_slice %9 {offsets = [0, 0, 16], sizes = [2, 8, 8], strides = [1, 1, 1]} : vector<2x8x32xf32> to vector<2x8x8xf32>
    %17 = vector.extract_strided_slice %9 {offsets = [0, 0, 24], sizes = [2, 8, 8], strides = [1, 1, 1]} : vector<2x8x32xf32> to vector<2x8x8xf32>
    %18 = tpu.concatenate %14, %15, %16, %17 in 0 : vector<2x8x8xf32>, vector<2x8x8xf32>, vector<2x8x8xf32>, vector<2x8x8xf32> -> vector<8x8x8xf32>
    %cst_6 = arith.constant 0.353553385 : f32
    %19 = vector.broadcast %cst_6 : f32 to vector<8x8x8xf32>
    %20 = arith.mulf %18, %19 : vector<8x8x8xf32>
    %21 = arith.truncf %20 : vector<8x8x8xf32> to vector<8x8x8xbf16>
    %22 = vector.extract_strided_slice %11 {offsets = [0, 0, 0], sizes = [2, 8, 8], strides = [1, 1, 1]} : vector<2x8x32xf32> to vector<2x8x8xf32>
    %23 = vector.extract_strided_slice %11 {offsets = [0, 0, 8], sizes = [2, 8, 8], strides = [1, 1, 1]} : vector<2x8x32xf32> to vector<2x8x8xf32>
    %24 = vector.extract_strided_slice %11 {offsets = [0, 0, 16], sizes = [2, 8, 8], strides = [1, 1, 1]} : vector<2x8x32xf32> to vector<2x8x8xf32>
    %25 = vector.extract_strided_slice %11 {offsets = [0, 0, 24], sizes = [2, 8, 8], strides = [1, 1, 1]} : vector<2x8x32xf32> to vector<2x8x8xf32>
    %26 = tpu.concatenate %22, %23, %24, %25 in 0 : vector<2x8x8xf32>, vector<2x8x8xf32>, vector<2x8x8xf32>, vector<2x8x8xf32> -> vector<8x8x8xf32>
    %27 = arith.truncf %26 : vector<8x8x8xf32> to vector<8x8x8xbf16>
    %28 = vector.extract_strided_slice %13 {offsets = [0, 0, 0], sizes = [2, 8, 8], strides = [1, 1, 1]} : vector<2x8x32xf32> to vector<2x8x8xf32>
    %29 = vector.extract_strided_slice %13 {offsets = [0, 0, 8], sizes = [2, 8, 8], strides = [1, 1, 1]} : vector<2x8x32xf32> to vector<2x8x8xf32>
    %30 = vector.extract_strided_slice %13 {offsets = [0, 0, 16], sizes = [2, 8, 8], strides = [1, 1, 1]} : vector<2x8x32xf32> to vector<2x8x8xf32>
    %31 = vector.extract_strided_slice %13 {offsets = [0, 0, 24], sizes = [2, 8, 8], strides = [1, 1, 1]} : vector<2x8x32xf32> to vector<2x8x8xf32>
    %32 = tpu.concatenate %28, %29, %30, %31 in 0 : vector<2x8x8xf32>, vector<2x8x8xf32>, vector<2x8x8xf32>, vector<2x8x8xf32> -> vector<8x8x8xf32>
    %33 = arith.truncf %32 : vector<8x8x8xf32> to vector<8x8x8xbf16>
    "tpu.trace_start"() <{level = 10 : i32, message = "bqd,bkd->bqk"}> : () -> ()
    %cst_7 = arith.constant dense<0.000000e+00> : vector<8x8x8xf32>
    %34 = tpu.matmul %21, %27, %cst_7 {dimension_numbers = #tpu.dot_dimension_numbers<[2], [2], [1], [1], [0, 0, 0, 1, 1, 1], [0], [0]>} : vector<8x8x8xbf16>, vector<8x8x8xbf16>, vector<8x8x8xf32> -> vector<8x8x8xf32>
    "tpu.trace_stop"() : () -> ()
    %cst_8 = arith.constant dense<0xFF800000> : vector<8x8xf32>
    %35 = vector.multi_reduction <maximumf>, %34, %cst_8 [2] : vector<8x8x8xf32> to vector<8x8xf32>
    %36 = vector.shape_cast %35 : vector<8x8xf32> to vector<8x8x1xf32>
    %37 = vector.broadcast %36 : vector<8x8x1xf32> to vector<8x8x8xf32>
    %38 = arith.subf %34, %37 : vector<8x8x8xf32>
    %39 = math.exp %38 : vector<8x8x8xf32>
    %cst_9 = arith.constant dense<0.000000e+00> : vector<8x8xf32>
    %40 = vector.multi_reduction <add>, %39, %cst_9 [2] : vector<8x8x8xf32> to vector<8x8xf32>
    %41 = vector.shape_cast %40 : vector<8x8xf32> to vector<8x8x1xf32>
    %42 = tpu.reciprocal %41 {approx = true} : vector<8x8x1xf32> -> vector<8x8x1xf32>
    %43 = vector.broadcast %42 : vector<8x8x1xf32> to vector<8x8x8xf32>
    %44 = arith.mulf %39, %43 : vector<8x8x8xf32>
    %45 = arith.truncf %44 : vector<8x8x8xf32> to vector<8x8x8xbf16>
    "tpu.trace_start"() <{level = 10 : i32, message = "bqk,bkd->bqd"}> : () -> ()
    %cst_10 = arith.constant dense<0.000000e+00> : vector<8x8x8xf32>
    %46 = tpu.matmul %45, %33, %cst_10 {dimension_numbers = #tpu.dot_dimension_numbers<[2], [1], [1], [2], [0, 0, 0, 1, 1, 2], [0], [0]>} : vector<8x8x8xbf16>, vector<8x8x8xbf16>, vector<8x8x8xf32> -> vector<8x8x8xf32>
    "tpu.trace_stop"() : () -> ()
    %47 = vector.extract_strided_slice %46 {offsets = [0, 0, 0], sizes = [2, 8, 8], strides = [1, 1, 1]} : vector<8x8x8xf32> to vector<2x8x8xf32>
    %48 = vector.extract_strided_slice %46 {offsets = [2, 0, 0], sizes = [2, 8, 8], strides = [1, 1, 1]} : vector<8x8x8xf32> to vector<2x8x8xf32>
    %49 = vector.extract_strided_slice %46 {offsets = [4, 0, 0], sizes = [2, 8, 8], strides = [1, 1, 1]} : vector<8x8x8xf32> to vector<2x8x8xf32>
    %50 = vector.extract_strided_slice %46 {offsets = [6, 0, 0], sizes = [2, 8, 8], strides = [1, 1, 1]} : vector<8x8x8xf32> to vector<2x8x8xf32>
    %51 = tpu.concatenate %47, %48, %49, %50 in 2 : vector<2x8x8xf32>, vector<2x8x8xf32>, vector<2x8x8xf32>, vector<2x8x8xf32> -> vector<2x8x32xf32>
    %52 = vector.shape_cast %51 : vector<2x8x32xf32> to vector<16x32xf32>
    %53 = arith.truncf %52 : vector<16x32xf32> to vector<16x32xbf16>
    %c0_11 = arith.constant 0 : index
    %c0_12 = arith.constant 0 : index
    %54 = vector.load %arg4[%c0_11, %c0_12] : memref<32x128xbf16, #tpu.memory_space<vmem>>, vector<32x128xbf16>
    %cst_13 = arith.constant dense<0.000000e+00> : vector<16x128xf32>
    %55 = tpu.matmul %53, %54, %cst_13 {dimension_numbers = #tpu.dot_dimension_numbers<[1], [0], [0], [1], [0, 0, 1, 1], [], []>} : vector<16x32xbf16>, vector<32x128xbf16>, vector<16x128xf32> -> vector<16x128xf32>
    %c0_14 = arith.constant 0 : index
    %c0_15 = arith.constant 0 : index
    %56 = vector.load %arg5[%c0_14, %c0_15] : memref<1x128xf32, #tpu.memory_space<vmem>>, vector<1x128xf32>
    %57 = vector.broadcast %56 : vector<1x128xf32> to vector<16x128xf32>
    %58 = arith.addf %55, %57 : vector<16x128xf32>
    %59 = arith.addf %58, %1 : vector<16x128xf32>
    %60 = vector.shape_cast %59 : vector<16x128xf32> to vector<2x8x128xf32>
    %cst_16 = arith.constant dense<0.000000e+00> : vector<8x128xf32>
    %61 = vector.multi_reduction <add>, %60, %cst_16 [0] : vector<2x8x128xf32> to vector<8x128xf32>
    %c0_i32 = arith.constant 0 : i32
    %62 = arith.cmpi eq, %arg0, %c0_i32 : i32
    %63 = arith.extui %62 : i1 to i32
    %c0_i32_17 = arith.constant 0 : i32
    %64 = arith.cmpi ne, %63, %c0_i32_17 : i32
    scf.if %64 {
      %cst_22 = arith.constant 0.000000e+00 : f32
      %68 = vector.broadcast %cst_22 : f32 to vector<8x128xf32>
      %c0_23 = arith.constant 0 : index
      %c0_24 = arith.constant 0 : index
      %69 = vector.load %arg6[%c0_23, %c0_24] : memref<8x128xf32, #tpu.memory_space<vmem>>, vector<8x128xf32>
      tpu.vector_store %arg6[%c0_23, %c0_24], %68 {strides = array<i32>} : memref<8x128xf32, #tpu.memory_space<vmem>>, vector<8x128xf32>,
    } else {
    }
    %c0_18 = arith.constant 0 : index
    %c0_19 = arith.constant 0 : index
    %65 = vector.load %arg6[%c0_18, %c0_19] : memref<8x128xf32, #tpu.memory_space<vmem>>, vector<8x128xf32>
    %66 = arith.addf %65, %61 : vector<8x128xf32>
    %c0_20 = arith.constant 0 : index
    %c0_21 = arith.constant 0 : index
    %67 = vector.load %arg6[%c0_20, %c0_21] : memref<8x128xf32, #tpu.memory_space<vmem>>, vector<8x128xf32>
    tpu.vector_store %arg6[%c0_20, %c0_21], %66 {strides = array<i32>} : memref<8x128xf32, #tpu.memory_space<vmem>>, vector<8x128xf32>,
    return
  }
  func.func @transform_0(%arg0: i32) -> (i32, i32, i32) {
    %c0_i32 = arith.constant 0 : i32
    %c0_i32_0 = arith.constant 0 : i32
    %c0_i32_1 = arith.constant 0 : i32
    return %arg0, %c0_i32, %c0_i32_0 : i32, i32, i32
  }
  func.func @transform_1(%arg0: i32) -> (i32, i32) {
    %c0_i32 = arith.constant 0 : i32
    %c0_i32_0 = arith.constant 0 : i32
    %c0_i32_1 = arith.constant 0 : i32
    return %c0_i32, %c0_i32_0 : i32, i32
  }
  func.func @transform_2(%arg0: i32) -> (i32, i32) {
    %c0_i32 = arith.constant 0 : i32
    %c0_i32_0 = arith.constant 0 : i32
    %c0_i32_1 = arith.constant 0 : i32
    return %c0_i32, %c0_i32_0 : i32, i32
  }
  func.func @transform_3(%arg0: i32) -> (i32, i32) {
    %c0_i32 = arith.constant 0 : i32
    %c0_i32_0 = arith.constant 0 : i32
    %c0_i32_1 = arith.constant 0 : i32
    return %c0_i32, %c0_i32_0 : i32, i32
  }
  func.func @transform_4(%arg0: i32) -> (i32, i32) {
    %c0_i32 = arith.constant 0 : i32
    %c0_i32_0 = arith.constant 0 : i32
    %c0_i32_1 = arith.constant 0 : i32
    return %c0_i32, %c0_i32_0 : i32, i32
  }
  func.func @transform_5(%arg0: i32) -> (i32, i32) {
    %c0_i32 = arith.constant 0 : i32
    %c0_i32_0 = arith.constant 0 : i32
    %c0_i32_1 = arith.constant 0 : i32
    return %c0_i32, %c0_i32_0 : i32, i32
  }
}

</mosaic_0001>

<llo_original>
// kernel: tpu_custom_call.1
$region0: #{tpu_custom_call.1}
  #allocation0 [shape = 'u32[]', space=smem, size = 0x4, offset = 0x4, fixed_abs, tag = 'smem constant byte address 0x4 - core index']
  #allocation1 [shape = 'u32[144,128]{1,0:T(1,128)}', space=vmem, size = 0x12000, scoped, tag = 'internal scratch']
  %s0 = inlined_call_operand.hbm [shape: f32[2,8,128], index: 0, kind: input, shape index: {}]
  %s1 = inlined_call_operand.hbm [shape: bf16[128,384], index: 1, kind: input, shape index: {}]
  %s2 = inlined_call_operand.vmem [shape: f32[1,384], index: 2, kind: input, shape index: {}]
  %s3 = inlined_call_operand.hbm [shape: bf16[32,128], index: 3, kind: input, shape index: {}]
  %s4 = inlined_call_operand.vmem [shape: f32[1,128], index: 4, kind: input, shape index: {}]
  %s5 = inlined_call_operand.hbm [shape: f32[8,128], index: 5, kind: output, shape index: {}]
  %s6 = sld [smem:[#allocation0]]
  $region46: #{tpu_custom_call.1} parent=0
    _
  %s8 = ssub.s32 1, %s6
  %s9 = scalar_select 0, %s8, %s6
  $region1: #{tpu_custom_call.1} parent=0
    #allocation2 [shape = 'u8[8192]{0}', space=vmem, size = 0x2000, scoped, tag = 'input window, operand 0, single buffered']
    #allocation3 [shape = 's32[1]{0}', space=sflag, size = 0x4, scoped, tag = 'scoped memory for tpu_custom_call.1']
    #allocation4 [shape = 's32[1]{0}', space=sflag, size = 0x4, scoped, tag = 'scoped memory for tpu_custom_call.1']
    #allocation5 [shape = 'u8[98304]{0}', space=vmem, size = 0x18000, scoped, tag = 'input window, operand 1, single buffered']
    #allocation6 [shape = 's32[1]{0}', space=sflag, size = 0x4, scoped, tag = 'scoped memory for tpu_custom_call.1']
    #allocation7 [shape = 'u8[8192]{0}', space=vmem, size = 0x2000, scoped, tag = 'input window, operand 3, single buffered']
    #allocation8 [shape = 'u8[4096]{0}', space=vmem, size = 0x1000, scoped, tag = 'output window, operand 0, single buffered']
    %10 = vsyncpa [#allocation3], 0
    %11 = vsyncpa [#allocation6], 0
    %12 = vsyncpa [#allocation4], 0
    // Predicated region
    $region2: #{tpu_custom_call.1} parent=1 // pred_check
      _
    $region3: #{tpu_custom_call.1} parent=1 // pred_check_branch
      %14 = sbr.rel (0) target = $region5
    $region4: #{tpu_custom_call.1} parent=1 // pred_region
      %s16 = ssub.s32 256, 256
      %17 = vsyncadd [#allocation3], %s16
      %s18 = sshll.u32 [#allocation2], 4
      %s19 = int_to_ptr.vmem [resolvable:$true] %s18
      %24 = dma.hbm_to_vmem [thread:$0]  %s0, 256, %s19, [#allocation3], 128, 128, 8
    $region5: #{tpu_custom_call.1} parent=1 // pred_fallthru
      _
    // Predicated region
    $region6: #{tpu_custom_call.1} parent=1 // pred_check
      _
    $region7: #{tpu_custom_call.1} parent=1 // pred_check_branch
      %26 = sbr.rel (0) target = $region9
    $region8: #{tpu_custom_call.1} parent=1 // pred_region
      %s28 = ssub.s32 3072, 3072
      %29 = vsyncadd [#allocation6], %s28
      %s30 = sshll.u32 [#allocation5], 4
      %s31 = int_to_ptr.vmem [resolvable:$true] %s30
      %36 = dma.hbm_to_vmem [thread:$0]  %s1, 3072, %s31, [#allocation6], 192, 192, 12
    $region9: #{tpu_custom_call.1} parent=1 // pred_fallthru
      _
    // Predicated region
    $region10: #{tpu_custom_call.1} parent=1 // pred_check
      _
    $region11: #{tpu_custom_call.1} parent=1 // pred_check_branch
      %38 = sbr.rel (0) target = $region13
    $region12: #{tpu_custom_call.1} parent=1 // pred_region
      _
    $region13: #{tpu_custom_call.1} parent=1 // pred_fallthru
      _
    // Predicated region
    $region14: #{tpu_custom_call.1} parent=1 // pred_check
      _
    $region15: #{tpu_custom_call.1} parent=1 // pred_check_branch
      %40 = sbr.rel (0) target = $region17
    $region16: #{tpu_custom_call.1} parent=1 // pred_region
      %s42 = ssub.s32 256, 256
      %43 = vsyncadd [#allocation6], %s42
      %s44 = sshll.u32 [#allocation7], 4
      %s45 = int_to_ptr.vmem [resolvable:$true] %s44
      %50 = dma.hbm_to_vmem [thread:$0]  %s3, 256, %s45, [#allocation6], 64, 64, 4
    $region17: #{tpu_custom_call.1} parent=1 // pred_fallthru
      _
    // Predicated region
    $region18: #{tpu_custom_call.1} parent=1 // pred_check
      _
    $region19: #{tpu_custom_call.1} parent=1 // pred_check_branch
      %52 = sbr.rel (0) target = $region21
    $region20: #{tpu_custom_call.1} parent=1 // pred_region
      _
    $region21: #{tpu_custom_call.1} parent=1 // pred_fallthru
      _
    // Predicated region
    $region22: #{tpu_custom_call.1} parent=1 // pred_check
      _
    $region23: #{tpu_custom_call.1} parent=1 // pred_check_branch
      %54 = sbr.rel (0) target = $region25
    $region24: #{tpu_custom_call.1} parent=1 // pred_region
      %55 = dma.done [#allocation3], 256
    $region25: #{tpu_custom_call.1} parent=1 // pred_fallthru
      _
    // Predicated region
    $region26: #{tpu_custom_call.1} parent=1 // pred_check
      _
    $region27: #{tpu_custom_call.1} parent=1 // pred_check_branch
      %57 = sbr.rel (0) target = $region29
    $region28: #{tpu_custom_call.1} parent=1 // pred_region
      %58 = dma.done [#allocation6], 3072
    $region29: #{tpu_custom_call.1} parent=1 // pred_fallthru
      _
    // Predicated region
    $region30: #{tpu_custom_call.1} parent=1 // pred_check
      _
    $region31: #{tpu_custom_call.1} parent=1 // pred_check_branch
      %60 = sbr.rel (0) target = $region33
    $region32: #{tpu_custom_call.1} parent=1 // pred_region
      %61 = dma.done [#allocation6], 256
    $region33: #{tpu_custom_call.1} parent=1 // pred_fallthru
      _
    %v63 = vld [vmem:[#allocation2] sm:$0xff]
    %v64 = vld [vmem:[#allocation2 + $0x8] sm:$0xff]
    %v65 = vpack.c.bf16 %v64, %v63
    %v66 = vld [vmem:[#allocation5] sm:$0xff]
    %v67 = vld [vmem:[#allocation5 + $0x8] sm:$0xf]
    %v68 = vld [vmem:[#allocation5 + $0xc] sm:$0xff]
    %v69 = vld [vmem:[#allocation5 + $0x14] sm:$0xf]
    %v70 = vld [vmem:[#allocation5 + $0x18] sm:$0xff]
    %v71 = vld [vmem:[#allocation5 + $0x20] sm:$0xf]
    %v72 = vld [vmem:[#allocation5 + $0x24] sm:$0xff]
    %v73 = vld [vmem:[#allocation5 + $0x2c] sm:$0xf]
    %v74 = vld [vmem:[#allocation5 + $0x30] sm:$0xff]
    %v75 = vld [vmem:[#allocation5 + $0x38] sm:$0xf]
    %v76 = vld [vmem:[#allocation5 + $0x3c] sm:$0xff]
    %v77 = vld [vmem:[#allocation5 + $0x44] sm:$0xf]
    %v78 = vld [vmem:[#allocation5 + $0x48] sm:$0xff]
    %v79 = vld [vmem:[#allocation5 + $0x50] sm:$0xf]
    %v80 = vld [vmem:[#allocation5 + $0x54] sm:$0xff]
    %v81 = vld [vmem:[#allocation5 + $0x5c] sm:$0xf]
    %v82 = vld [vmem:[#allocation5 + $0x60] sm:$0xff]
    %v83 = vld [vmem:[#allocation5 + $0x68] sm:$0xf]
    %v84 = vld [vmem:[#allocation5 + $0x6c] sm:$0xff]
    %v85 = vld [vmem:[#allocation5 + $0x74] sm:$0xf]
    %v86 = vld [vmem:[#allocation5 + $0x78] sm:$0xff]
    %v87 = vld [vmem:[#allocation5 + $0x80] sm:$0xf]
    %v88 = vld [vmem:[#allocation5 + $0x84] sm:$0xff]
    %v89 = vld [vmem:[#allocation5 + $0x8c] sm:$0xf]
    %v90 = vld [vmem:[#allocation5 + $0x90] sm:$0xff]
    %v91 = vld [vmem:[#allocation5 + $0x98] sm:$0xf]
    %v92 = vld [vmem:[#allocation5 + $0x9c] sm:$0xff]
    %v93 = vld [vmem:[#allocation5 + $0xa4] sm:$0xf]
    %v94 = vld [vmem:[#allocation5 + $0xa8] sm:$0xff]
    %v95 = vld [vmem:[#allocation5 + $0xb0] sm:$0xf]
    %v96 = vld [vmem:[#allocation5 + $0xb4] sm:$0xff]
    %v97 = vld [vmem:[#allocation5 + $0xbc] sm:$0xf]
    %v98 = vld [vmem:[%s2] sm:$0x7]
    %v100 = vlaneseq
    %v101 = vshrl.u32 %v100, 7
    %v102 = vsub.s32 0, %v101
    %v103 = vrot.slane %v98, %v102
    %v104 = vlaneseq
    %v105 = vshrl.u32 %v104, 7
    %v106 = vsub.s32 1, %v105
    %v107 = vrot.slane %v98, %v106
    %v108 = vlaneseq
    %v109 = vshrl.u32 %v108, 7
    %v110 = vsub.s32 2, %v109
    %v111 = vrot.slane %v98, %v110
    %v147 = vunpack.c.l.b16 %v66
    %v148 = vunpack.c.h.b16 %v66
    %v149 = vunpack.c.l.b16 %v67
    %v150 = vunpack.c.l.b16 %v68
    %v151 = vunpack.c.h.b16 %v68
    %v152 = vunpack.c.l.b16 %v69
    %v153 = vunpack.c.l.b16 %v70
    %v154 = vunpack.c.h.b16 %v70
    %v155 = vunpack.c.l.b16 %v71
    %v156 = vunpack.c.l.b16 %v72
    %v157 = vunpack.c.h.b16 %v72
    %v158 = vunpack.c.l.b16 %v73
    %v159 = vunpack.c.l.b16 %v74
    %v160 = vunpack.c.h.b16 %v74
    %v161 = vunpack.c.l.b16 %v75
    %v162 = vunpack.c.l.b16 %v76
    %v163 = vunpack.c.h.b16 %v76
    %v164 = vunpack.c.l.b16 %v77
    %v165 = vunpack.c.l.b16 %v78
    %v166 = vunpack.c.h.b16 %v78
    %v167 = vunpack.c.l.b16 %v79
    %v168 = vunpack.c.l.b16 %v80
    %v169 = vunpack.c.h.b16 %v80
    %v170 = vunpack.c.l.b16 %v81
    %v171 = vunpack.c.l.b16 %v82
    %v172 = vunpack.c.h.b16 %v82
    %v173 = vunpack.c.l.b16 %v83
    %v174 = vunpack.c.l.b16 %v84
    %v175 = vunpack.c.h.b16 %v84
    %v176 = vunpack.c.l.b16 %v85
    %v177 = vunpack.c.l.b16 %v86
    %v178 = vunpack.c.h.b16 %v86
    %v179 = vunpack.c.l.b16 %v87
    %v180 = vunpack.c.l.b16 %v88
    %v181 = vunpack.c.h.b16 %v88
    %v182 = vunpack.c.l.b16 %v89
    %v183 = vunpack.c.l.b16 %v90
    %v184 = vunpack.c.h.b16 %v90
    %v185 = vunpack.c.l.b16 %v91
    %v186 = vunpack.c.l.b16 %v92
    %v187 = vunpack.c.h.b16 %v92
    %v188 = vunpack.c.l.b16 %v93
    %v189 = vunpack.c.l.b16 %v94
    %v190 = vunpack.c.h.b16 %v94
    %v191 = vunpack.c.l.b16 %v95
    %v192 = vunpack.c.l.b16 %v96
    %v193 = vunpack.c.h.b16 %v96
    %v194 = vunpack.c.l.b16 %v97
    %v195 = vpack.c.b16 %v150, %v147
    %v196 = vpack.c.b16 %v151, %v148
    %v197 = vpack.c.b16 %v152, %v149
    %v198 = vpack.c.b16 %v156, %v153
    %v199 = vpack.c.b16 %v157, %v154
    %v200 = vpack.c.b16 %v158, %v155
    %v201 = vpack.c.b16 %v162, %v159
    %v202 = vpack.c.b16 %v163, %v160
    %v203 = vpack.c.b16 %v164, %v161
    %v204 = vpack.c.b16 %v168, %v165
    %v205 = vpack.c.b16 %v169, %v166
    %v206 = vpack.c.b16 %v170, %v167
    %v207 = vpack.c.b16 %v174, %v171
    %v208 = vpack.c.b16 %v175, %v172
    %v209 = vpack.c.b16 %v176, %v173
    %v210 = vpack.c.b16 %v180, %v177
    %v211 = vpack.c.b16 %v181, %v178
    %v212 = vpack.c.b16 %v182, %v179
    %v213 = vpack.c.b16 %v186, %v183
    %v214 = vpack.c.b16 %v187, %v184
    %v215 = vpack.c.b16 %v188, %v185
    %v216 = vpack.c.b16 %v192, %v189
    %v217 = vpack.c.b16 %v193, %v190
    %v218 = vpack.c.b16 %v194, %v191
    %243 = vmatprep.subr.bf16.mxu0 %v196
    %244 = vmatpush1.bf16.msra.mxu0 %v195
    %245 = vmatprep.subr.bf16.mxu0 %v199
    %246 = vmatpush1.bf16.msra.mxu0 %v198
    %247 = vmatprep.subr.bf16.mxu0 %v202
    %248 = vmatpush1.bf16.msra.mxu0 %v201
    %249 = vmatprep.subr.bf16.mxu0 %v205
    %250 = vmatpush1.bf16.msra.mxu0 %v204
    %251 = vmatprep.subr.bf16.mxu0 %v208
    %252 = vmatpush1.bf16.msra.mxu0 %v207
    %253 = vmatprep.subr.bf16.mxu0 %v211
    %254 = vmatpush1.bf16.msra.mxu0 %v210
    %255 = vmatprep.subr.bf16.mxu0 %v214
    %256 = vmatpush1.bf16.msra.mxu0 %v213
    %257 = vmatprep.subr.bf16.mxu0 %v217
    %258 = vmatpush1.bf16.msra.mxu0 %v216
    %259 = vmatprep.subr.bf16.mxu0 0
    %260 = vmatpush1.bf16.msra.mxu0 0
    %261 = vmatprep.subr.bf16.mxu0 0
    %262 = vmatpush1.bf16.msra.mxu0 0
    %263 = vmatprep.subr.bf16.mxu0 0
    %264 = vmatpush1.bf16.msra.mxu0 0
    %265 = vmatprep.subr.bf16.mxu0 0
    %266 = vmatpush1.bf16.msra.mxu0 0
    %267 = vmatprep.subr.bf16.mxu0 0
    %268 = vmatpush1.bf16.msra.mxu0 0
    %269 = vmatprep.subr.bf16.mxu0 0
    %270 = vmatpush1.bf16.msra.mxu0 0
    %271 = vmatprep.subr.bf16.mxu0 0
    %272 = vmatpush1.bf16.msra.mxu0 0
    %273 = vmatprep.subr.bf16.mxu0 0
    %274 = vmatpush1.bf16.msra.mxu0 0
    %275 = vmatprep.mubr.bf16.mxu0 0
    %276 = vmatmul.mubr.bf16.gmra.mrb[0].mxu0 %v65
    %v277 = vpop.f32.mrb[0].mxu0
    %v278 = vadd.f32 %v103, %v277
    %v279 = vpop.f32.mrb[0].mxu0
    %v280 = vadd.f32 %v107, %v279
    %v281 = vpop.f32.mrb[0].mxu0
    %v282 = vadd.f32 %v103, %v281
    %v283 = vpop.f32.mrb[0].mxu0
    %v284 = vadd.f32 %v107, %v283
    %285 = vdwg.mxu0
    %286 = vmatprep.subr.bf16.mxu0 0
    %287 = vmatpush1.bf16.msra.mxu0 %v197
    %288 = vmatprep.subr.bf16.mxu0 0
    %289 = vmatpush1.bf16.msra.mxu0 %v200
    %290 = vmatprep.subr.bf16.mxu0 0
    %291 = vmatpush1.bf16.msra.mxu0 %v203
    %292 = vmatprep.subr.bf16.mxu0 0
    %293 = vmatpush1.bf16.msra.mxu0 %v206
    %294 = vmatprep.subr.bf16.mxu0 0
    %295 = vmatpush1.bf16.msra.mxu0 %v209
    %296 = vmatprep.subr.bf16.mxu0 0
    %297 = vmatpush1.bf16.msra.mxu0 %v212
    %298 = vmatprep.subr.bf16.mxu0 0
    %299 = vmatpush1.bf16.msra.mxu0 %v215
    %300 = vmatprep.subr.bf16.mxu0 0
    %301 = vmatpush1.bf16.msra.mxu0 %v218
    %302 = vmatprep.subr.bf16.mxu0 0
    %303 = vmatpush1.bf16.msra.mxu0 0
    %304 = vmatprep.subr.bf16.mxu0 0
    %305 = vmatpush1.bf16.msra.mxu0 0
    %306 = vmatprep.subr.bf16.mxu0 0
    %307 = vmatpush1.bf16.msra.mxu0 0
    %308 = vmatprep.subr.bf16.mxu0 0
    %309 = vmatpush1.bf16.msra.mxu0 0
    %310 = vmatprep.subr.bf16.mxu0 0
    %311 = vmatpush1.bf16.msra.mxu0 0
    %312 = vmatprep.subr.bf16.mxu0 0
    %313 = vmatpush1.bf16.msra.mxu0 0
    %314 = vmatprep.subr.bf16.mxu0 0
    %315 = vmatpush1.bf16.msra.mxu0 0
    %316 = vmatprep.subr.bf16.mxu0 0
    %317 = vmatpush1.bf16.msra.mxu0 0
    %318 = vmatprep.mubr.bf16.mxu0 0
    %319 = vmatmul.mubr.bf16.gmra.mrb[0].mxu0 %v65
    %v320 = vpop.f32.mrb[0].mxu0
    %v321 = vadd.f32 %v111, %v320
    %v322 = vpop.f32.mrb[0].mxu0
    %v323 = vpop.f32.mrb[0].mxu0
    %v324 = vadd.f32 %v111, %v323
    %v325 = vpop.f32.mrb[0].mxu0
    %326 = vdwg.mxu0
    %329 = vrot.lane.b32.xlu0 %v278, 120
    %v330 = vpop.permute.xlu0 %329
    %331 = vrot.lane.b32.xlu0 %v282, 120
    %v332 = vpop.permute.xlu0 %331
    %335 = vrot.lane.b32.xlu0 %v278, 112
    %v336 = vpop.permute.xlu0 %335
    %337 = vrot.lane.b32.xlu0 %v282, 112
    %v338 = vpop.permute.xlu0 %337
    %341 = vrot.lane.b32.xlu0 %v278, 104
    %v342 = vpop.permute.xlu0 %341
    %343 = vrot.lane.b32.xlu0 %v282, 104
    %v344 = vpop.permute.xlu0 %343
    %v347 = vmul.f32 %v278, 0.35355338
    %v348 = vmul.f32 %v282, 0.35355338
    %v349 = vmul.f32 %v330, 0.35355338
    %v350 = vmul.f32 %v332, 0.35355338
    %v351 = vmul.f32 %v336, 0.35355338
    %v352 = vmul.f32 %v338, 0.35355338
    %v353 = vmul.f32 %v342, 0.35355338
    %v354 = vmul.f32 %v344, 0.35355338
    %v355 = vpack.c.bf16 %v347, %v347
    %v356 = vpack.c.bf16 %v348, %v348
    %v357 = vpack.c.bf16 %v349, %v349
    %v358 = vpack.c.bf16 %v350, %v350
    %v359 = vpack.c.bf16 %v351, %v351
    %v360 = vpack.c.bf16 %v352, %v352
    %v361 = vpack.c.bf16 %v353, %v353
    %v362 = vpack.c.bf16 %v354, %v354
    %365 = vrot.lane.b32.xlu0 %v280, 120
    %v366 = vpop.permute.xlu0 %365
    %367 = vrot.lane.b32.xlu0 %v284, 120
    %v368 = vpop.permute.xlu0 %367
    %371 = vrot.lane.b32.xlu0 %v280, 112
    %v372 = vpop.permute.xlu0 %371
    %373 = vrot.lane.b32.xlu0 %v284, 112
    %v374 = vpop.permute.xlu0 %373
    %377 = vrot.lane.b32.xlu0 %v280, 104
    %v378 = vpop.permute.xlu0 %377
    %379 = vrot.lane.b32.xlu0 %v284, 104
    %v380 = vpop.permute.xlu0 %379
    %v383 = vpack.c.bf16 %v280, %v280
    %v384 = vpack.c.bf16 %v284, %v284
    %v385 = vpack.c.bf16 %v366, %v366
    %v386 = vpack.c.bf16 %v368, %v368
    %v387 = vpack.c.bf16 %v372, %v372
    %v388 = vpack.c.bf16 %v374, %v374
    %v389 = vpack.c.bf16 %v378, %v378
    %v390 = vpack.c.bf16 %v380, %v380
    %393 = vrot.lane.b32.xlu0 %v321, 120
    %v394 = vpop.permute.xlu0 %393
    %395 = vrot.lane.b32.xlu0 %v324, 120
    %v396 = vpop.permute.xlu0 %395
    %399 = vrot.lane.b32.xlu0 %v321, 112
    %v400 = vpop.permute.xlu0 %399
    %401 = vrot.lane.b32.xlu0 %v324, 112
    %v402 = vpop.permute.xlu0 %401
    %405 = vrot.lane.b32.xlu0 %v321, 104
    %v406 = vpop.permute.xlu0 %405
    %407 = vrot.lane.b32.xlu0 %v324, 104
    %v408 = vpop.permute.xlu0 %407
    %v411 = vpack.c.bf16 %v321, %v321
    %v412 = vpack.c.bf16 %v324, %v324
    %v413 = vpack.c.bf16 %v394, %v394
    %v414 = vpack.c.bf16 %v396, %v396
    %v415 = vpack.c.bf16 %v400, %v400
    %v416 = vpack.c.bf16 %v402, %v402
    %v417 = vpack.c.bf16 %v406, %v406
    %v418 = vpack.c.bf16 %v408, %v408
    %vm419 = vcmask 64512
    %v421 = vsel %vm419, %v355, 0
    %v424 = vsel %vm419, %v383, 0
    %426 = vmatprep.subr.bf16.mxu0 0
    %427 = vmatpush1.bf16.xpose.msra.mxu0 %v424
    %428 = vmatprep.subr.bf16.mxu0 0
    %429 = vmatpush1.bf16.xpose.msra.mxu0 0
    %430 = vmatprep.subr.bf16.mxu0 0
    %431 = vmatpush1.bf16.xpose.msra.mxu0 0
    %432 = vmatprep.subr.bf16.mxu0 0
    %433 = vmatpush1.bf16.xpose.msra.mxu0 0
    %434 = vmatprep.subr.bf16.mxu0 0
    %435 = vmatpush1.bf16.xpose.msra.mxu0 0
    %436 = vmatprep.subr.bf16.mxu0 0
    %437 = vmatpush1.bf16.xpose.msra.mxu0 0
    %438 = vmatprep.subr.bf16.mxu0 0
    %439 = vmatpush1.bf16.xpose.msra.mxu0 0
    %440 = vmatprep.subr.bf16.mxu0 0
    %441 = vmatpush1.bf16.xpose.msra.mxu0 0
    %442 = vmatprep.subr.bf16.mxu0 0
    %443 = vmatpush1.bf16.xpose.msra.mxu0 0
    %444 = vmatprep.subr.bf16.mxu0 0
    %445 = vmatpush1.bf16.xpose.msra.mxu0 0
    %446 = vmatprep.subr.bf16.mxu0 0
    %447 = vmatpush1.bf16.xpose.msra.mxu0 0
    %448 = vmatprep.subr.bf16.mxu0 0
    %449 = vmatpush1.bf16.xpose.msra.mxu0 0
    %450 = vmatprep.subr.bf16.mxu0 0
    %451 = vmatpush1.bf16.xpose.msra.mxu0 0
    %452 = vmatprep.subr.bf16.mxu0 0
    %453 = vmatpush1.bf16.xpose.msra.mxu0 0
    %454 = vmatprep.subr.bf16.mxu0 0
    %455 = vmatpush1.bf16.xpose.msra.mxu0 0
    %456 = vmatprep.subr.bf16.mxu0 0
    %457 = vmatpush1.bf16.xpose.msra.mxu0 0
    %458 = vmatprep.mubr.bf16.mxu0 0
    %459 = vmatmul.mubr.bf16.gmra.mrb[0].mxu0 %v421
    %v460 = vpop.f32.mrb[0].mxu0
    %v461 = vadd.f32 0.0, %v460
    %v462 = vpop.f32.mrb[0].mxu0
    %v463 = vpop.f32.mrb[0].mxu0
    %v464 = vpop.f32.mrb[0].mxu0
    %465 = vdwg.mxu0
    %v467 = vsel %vm419, %v356, 0
    %v470 = vsel %vm419, %v384, 0
    %472 = vmatprep.subr.bf16.mxu0 0
    %473 = vmatpush1.bf16.xpose.msra.mxu0 %v470
    %474 = vmatprep.subr.bf16.mxu0 0
    %475 = vmatpush1.bf16.xpose.msra.mxu0 0
    %476 = vmatprep.subr.bf16.mxu0 0
    %477 = vmatpush1.bf16.xpose.msra.mxu0 0
    %478 = vmatprep.subr.bf16.mxu0 0
    %479 = vmatpush1.bf16.xpose.msra.mxu0 0
    %480 = vmatprep.subr.bf16.mxu0 0
    %481 = vmatpush1.bf16.xpose.msra.mxu0 0
    %482 = vmatprep.subr.bf16.mxu0 0
    %483 = vmatpush1.bf16.xpose.msra.mxu0 0
    %484 = vmatprep.subr.bf16.mxu0 0
    %485 = vmatpush1.bf16.xpose.msra.mxu0 0
    %486 = vmatprep.subr.bf16.mxu0 0
    %487 = vmatpush1.bf16.xpose.msra.mxu0 0
    %488 = vmatprep.subr.bf16.mxu0 0
    %489 = vmatpush1.bf16.xpose.msra.mxu0 0
    %490 = vmatprep.subr.bf16.mxu0 0
    %491 = vmatpush1.bf16.xpose.msra.mxu0 0
    %492 = vmatprep.subr.bf16.mxu0 0
    %493 = vmatpush1.bf16.xpose.msra.mxu0 0
    %494 = vmatprep.subr.bf16.mxu0 0
    %495 = vmatpush1.bf16.xpose.msra.mxu0 0
    %496 = vmatprep.subr.bf16.mxu0 0
    %497 = vmatpush1.bf16.xpose.msra.mxu0 0
    %498 = vmatprep.subr.bf16.mxu0 0
    %499 = vmatpush1.bf16.xpose.msra.mxu0 0
    %500 = vmatprep.subr.bf16.mxu0 0
    %501 = vmatpush1.bf16.xpose.msra.mxu0 0
    %502 = vmatprep.subr.bf16.mxu0 0
    %503 = vmatpush1.bf16.xpose.msra.mxu0 0
    %504 = vmatprep.mubr.bf16.mxu0 0
    %505 = vmatmul.mubr.bf16.gmra.mrb[0].mxu0 %v467
    %v506 = vpop.f32.mrb[0].mxu0
    %v507 = vadd.f32 0.0, %v506
    %v508 = vpop.f32.mrb[0].mxu0
    %v509 = vpop.f32.mrb[0].mxu0
    %v510 = vpop.f32.mrb[0].mxu0
    %511 = vdwg.mxu0
    %v513 = vsel %vm419, %v357, 0
    %v516 = vsel %vm419, %v385, 0
    %518 = vmatprep.subr.bf16.mxu0 0
    %519 = vmatpush1.bf16.xpose.msra.mxu0 %v516
    %520 = vmatprep.subr.bf16.mxu0 0
    %521 = vmatpush1.bf16.xpose.msra.mxu0 0
    %522 = vmatprep.subr.bf16.mxu0 0
    %523 = vmatpush1.bf16.xpose.msra.mxu0 0
    %524 = vmatprep.subr.bf16.mxu0 0
    %525 = vmatpush1.bf16.xpose.msra.mxu0 0
    %526 = vmatprep.subr.bf16.mxu0 0
    %527 = vmatpush1.bf16.xpose.msra.mxu0 0
    %528 = vmatprep.subr.bf16.mxu0 0
    %529 = vmatpush1.bf16.xpose.msra.mxu0 0
    %530 = vmatprep.subr.bf16.mxu0 0
    %531 = vmatpush1.bf16.xpose.msra.mxu0 0
    %532 = vmatprep.subr.bf16.mxu0 0
    %533 = vmatpush1.bf16.xpose.msra.mxu0 0
    %534 = vmatprep.subr.bf16.mxu0 0
    %535 = vmatpush1.bf16.xpose.msra.mxu0 0
    %536 = vmatprep.subr.bf16.mxu0 0
    %537 = vmatpush1.bf16.xpose.msra.mxu0 0
    %538 = vmatprep.subr.bf16.mxu0 0
    %539 = vmatpush1.bf16.xpose.msra.mxu0 0
    %540 = vmatprep.subr.bf16.mxu0 0
    %541 = vmatpush1.bf16.xpose.msra.mxu0 0
    %542 = vmatprep.subr.bf16.mxu0 0
    %543 = vmatpush1.bf16.xpose.msra.mxu0 0
    %544 = vmatprep.subr.bf16.mxu0 0
    %545 = vmatpush1.bf16.xpose.msra.mxu0 0
    %546 = vmatprep.subr.bf16.mxu0 0
    %547 = vmatpush1.bf16.xpose.msra.mxu0 0
    %548 = vmatprep.subr.bf16.mxu0 0
    %549 = vmatpush1.bf16.xpose.msra.mxu0 0
    %550 = vmatprep.mubr.bf16.mxu0 0
    %551 = vmatmul.mubr.bf16.gmra.mrb[0].mxu0 %v513
    %v552 = vpop.f32.mrb[0].mxu0
    %v553 = vadd.f32 0.0, %v552
    %v554 = vpop.f32.mrb[0].mxu0
    %v555 = vpop.f32.mrb[0].mxu0
    %v556 = vpop.f32.mrb[0].mxu0
    %557 = vdwg.mxu0
    %v559 = vsel %vm419, %v358, 0
    %v562 = vsel %vm419, %v386, 0
    %564 = vmatprep.subr.bf16.mxu0 0
    %565 = vmatpush1.bf16.xpose.msra.mxu0 %v562
    %566 = vmatprep.subr.bf16.mxu0 0
    %567 = vmatpush1.bf16.xpose.msra.mxu0 0
    %568 = vmatprep.subr.bf16.mxu0 0
    %569 = vmatpush1.bf16.xpose.msra.mxu0 0
    %570 = vmatprep.subr.bf16.mxu0 0
    %571 = vmatpush1.bf16.xpose.msra.mxu0 0
    %572 = vmatprep.subr.bf16.mxu0 0
    %573 = vmatpush1.bf16.xpose.msra.mxu0 0
    %574 = vmatprep.subr.bf16.mxu0 0
    %575 = vmatpush1.bf16.xpose.msra.mxu0 0
    %576 = vmatprep.subr.bf16.mxu0 0
    %577 = vmatpush1.bf16.xpose.msra.mxu0 0
    %578 = vmatprep.subr.bf16.mxu0 0
    %579 = vmatpush1.bf16.xpose.msra.mxu0 0
    %580 = vmatprep.subr.bf16.mxu0 0
    %581 = vmatpush1.bf16.xpose.msra.mxu0 0
    %582 = vmatprep.subr.bf16.mxu0 0
    %583 = vmatpush1.bf16.xpose.msra.mxu0 0
    %584 = vmatprep.subr.bf16.mxu0 0
    %585 = vmatpush1.bf16.xpose.msra.mxu0 0
    %586 = vmatprep.subr.bf16.mxu0 0
    %587 = vmatpush1.bf16.xpose.msra.mxu0 0
    %588 = vmatprep.subr.bf16.mxu0 0
    %589 = vmatpush1.bf16.xpose.msra.mxu0 0
    %590 = vmatprep.subr.bf16.mxu0 0
    %591 = vmatpush1.bf16.xpose.msra.mxu0 0
    %592 = vmatprep.subr.bf16.mxu0 0
    %593 = vmatpush1.bf16.xpose.msra.mxu0 0
    %594 = vmatprep.subr.bf16.mxu0 0
    %595 = vmatpush1.bf16.xpose.msra.mxu0 0
    %596 = vmatprep.mubr.bf16.mxu0 0
    %597 = vmatmul.mubr.bf16.gmra.mrb[0].mxu0 %v559
    %v598 = vpop.f32.mrb[0].mxu0
    %v599 = vadd.f32 0.0, %v598
    %v600 = vpop.f32.mrb[0].mxu0
    %v601 = vpop.f32.mrb[0].mxu0
    %v602 = vpop.f32.mrb[0].mxu0
    %603 = vdwg.mxu0
    %v605 = vsel %vm419, %v359, 0
    %v608 = vsel %vm419, %v387, 0
    %610 = vmatprep.subr.bf16.mxu0 0
    %611 = vmatpush1.bf16.xpose.msra.mxu0 %v608
    %612 = vmatprep.subr.bf16.mxu0 0
    %613 = vmatpush1.bf16.xpose.msra.mxu0 0
    %614 = vmatprep.subr.bf16.mxu0 0
    %615 = vmatpush1.bf16.xpose.msra.mxu0 0
    %616 = vmatprep.subr.bf16.mxu0 0
    %617 = vmatpush1.bf16.xpose.msra.mxu0 0
    %618 = vmatprep.subr.bf16.mxu0 0
    %619 = vmatpush1.bf16.xpose.msra.mxu0 0
    %620 = vmatprep.subr.bf16.mxu0 0
    %621 = vmatpush1.bf16.xpose.msra.mxu0 0
    %622 = vmatprep.subr.bf16.mxu0 0
    %623 = vmatpush1.bf16.xpose.msra.mxu0 0
    %624 = vmatprep.subr.bf16.mxu0 0
    %625 = vmatpush1.bf16.xpose.msra.mxu0 0
    %626 = vmatprep.subr.bf16.mxu0 0
    %627 = vmatpush1.bf16.xpose.msra.mxu0 0
    %628 = vmatprep.subr.bf16.mxu0 0
    %629 = vmatpush1.bf16.xpose.msra.mxu0 0
    %630 = vmatprep.subr.bf16.mxu0 0
    %631 = vmatpush1.bf16.xpose.msra.mxu0 0
    %632 = vmatprep.subr.bf16.mxu0 0
    %633 = vmatpush1.bf16.xpose.msra.mxu0 0
    %634 = vmatprep.subr.bf16.mxu0 0
    %635 = vmatpush1.bf16.xpose.msra.mxu0 0
    %636 = vmatprep.subr.bf16.mxu0 0
    %637 = vmatpush1.bf16.xpose.msra.mxu0 0
    %638 = vmatprep.subr.bf16.mxu0 0
    %639 = vmatpush1.bf16.xpose.msra.mxu0 0
    %640 = vmatprep.subr.bf16.mxu0 0
    %641 = vmatpush1.bf16.xpose.msra.mxu0 0
    %642 = vmatprep.mubr.bf16.mxu0 0
    %643 = vmatmul.mubr.bf16.gmra.mrb[0].mxu0 %v605
    %v644 = vpop.f32.mrb[0].mxu0
    %v645 = vadd.f32 0.0, %v644
    %v646 = vpop.f32.mrb[0].mxu0
    %v647 = vpop.f32.mrb[0].mxu0
    %v648 = vpop.f32.mrb[0].mxu0
    %649 = vdwg.mxu0
    %v651 = vsel %vm419, %v360, 0
    %v654 = vsel %vm419, %v388, 0
    %656 = vmatprep.subr.bf16.mxu0 0
    %657 = vmatpush1.bf16.xpose.msra.mxu0 %v654
    %658 = vmatprep.subr.bf16.mxu0 0
    %659 = vmatpush1.bf16.xpose.msra.mxu0 0
    %660 = vmatprep.subr.bf16.mxu0 0
    %661 = vmatpush1.bf16.xpose.msra.mxu0 0
    %662 = vmatprep.subr.bf16.mxu0 0
    %663 = vmatpush1.bf16.xpose.msra.mxu0 0
    %664 = vmatprep.subr.bf16.mxu0 0
    %665 = vmatpush1.bf16.xpose.msra.mxu0 0
    %666 = vmatprep.subr.bf16.mxu0 0
    %667 = vmatpush1.bf16.xpose.msra.mxu0 0
    %668 = vmatprep.subr.bf16.mxu0 0
    %669 = vmatpush1.bf16.xpose.msra.mxu0 0
    %670 = vmatprep.subr.bf16.mxu0 0
    %671 = vmatpush1.bf16.xpose.msra.mxu0 0
    %672 = vmatprep.subr.bf16.mxu0 0
    %673 = vmatpush1.bf16.xpose.msra.mxu0 0
    %674 = vmatprep.subr.bf16.mxu0 0
    %675 = vmatpush1.bf16.xpose.msra.mxu0 0
    %676 = vmatprep.subr.bf16.mxu0 0
    %677 = vmatpush1.bf16.xpose.msra.mxu0 0
    %678 = vmatprep.subr.bf16.mxu0 0
    %679 = vmatpush1.bf16.xpose.msra.mxu0 0
    %680 = vmatprep.subr.bf16.mxu0 0
    %681 = vmatpush1.bf16.xpose.msra.mxu0 0
    %682 = vmatprep.subr.bf16.mxu0 0
    %683 = vmatpush1.bf16.xpose.msra.mxu0 0
    %684 = vmatprep.subr.bf16.mxu0 0
    %685 = vmatpush1.bf16.xpose.msra.mxu0 0
    %686 = vmatprep.subr.bf16.mxu0 0
    %687 = vmatpush1.bf16.xpose.msra.mxu0 0
    %688 = vmatprep.mubr.bf16.mxu0 0
    %689 = vmatmul.mubr.bf16.gmra.mrb[0].mxu0 %v651
    %v690 = vpop.f32.mrb[0].mxu0
    %v691 = vadd.f32 0.0, %v690
    %v692 = vpop.f32.mrb[0].mxu0
    %v693 = vpop.f32.mrb[0].mxu0
    %v694 = vpop.f32.mrb[0].mxu0
    %695 = vdwg.mxu0
    %v697 = vsel %vm419, %v361, 0
    %v700 = vsel %vm419, %v389, 0
    %702 = vmatprep.subr.bf16.mxu0 0
    %703 = vmatpush1.bf16.xpose.msra.mxu0 %v700
    %704 = vmatprep.subr.bf16.mxu0 0
    %705 = vmatpush1.bf16.xpose.msra.mxu0 0
    %706 = vmatprep.subr.bf16.mxu0 0
    %707 = vmatpush1.bf16.xpose.msra.mxu0 0
    %708 = vmatprep.subr.bf16.mxu0 0
    %709 = vmatpush1.bf16.xpose.msra.mxu0 0
    %710 = vmatprep.subr.bf16.mxu0 0
    %711 = vmatpush1.bf16.xpose.msra.mxu0 0
    %712 = vmatprep.subr.bf16.mxu0 0
    %713 = vmatpush1.bf16.xpose.msra.mxu0 0
    %714 = vmatprep.subr.bf16.mxu0 0
    %715 = vmatpush1.bf16.xpose.msra.mxu0 0
    %716 = vmatprep.subr.bf16.mxu0 0
    %717 = vmatpush1.bf16.xpose.msra.mxu0 0
    %718 = vmatprep.subr.bf16.mxu0 0
    %719 = vmatpush1.bf16.xpose.msra.mxu0 0
    %720 = vmatprep.subr.bf16.mxu0 0
    %721 = vmatpush1.bf16.xpose.msra.mxu0 0
    %722 = vmatprep.subr.bf16.mxu0 0
    %723 = vmatpush1.bf16.xpose.msra.mxu0 0
    %724 = vmatprep.subr.bf16.mxu0 0
    %725 = vmatpush1.bf16.xpose.msra.mxu0 0
    %726 = vmatprep.subr.bf16.mxu0 0
    %727 = vmatpush1.bf16.xpose.msra.mxu0 0
    %728 = vmatprep.subr.bf16.mxu0 0
    %729 = vmatpush1.bf16.xpose.msra.mxu0 0
    %730 = vmatprep.subr.bf16.mxu0 0
    %731 = vmatpush1.bf16.xpose.msra.mxu0 0
    %732 = vmatprep.subr.bf16.mxu0 0
    %733 = vmatpush1.bf16.xpose.msra.mxu0 0
    %734 = vmatprep.mubr.bf16.mxu0 0
    %735 = vmatmul.mubr.bf16.gmra.mrb[0].mxu0 %v697
    %v736 = vpop.f32.mrb[0].mxu0
    %v737 = vadd.f32 0.0, %v736
    %v738 = vpop.f32.mrb[0].mxu0
    %v739 = vpop.f32.mrb[0].mxu0
    %v740 = vpop.f32.mrb[0].mxu0
    %741 = vdwg.mxu0
    %v743 = vsel %vm419, %v362, 0
    %v746 = vsel %vm419, %v390, 0
    %748 = vmatprep.subr.bf16.mxu0 0
    %749 = vmatpush1.bf16.xpose.msra.mxu0 %v746
    %750 = vmatprep.subr.bf16.mxu0 0
    %751 = vmatpush1.bf16.xpose.msra.mxu0 0
    %752 = vmatprep.subr.bf16.mxu0 0
    %753 = vmatpush1.bf16.xpose.msra.mxu0 0
    %754 = vmatprep.subr.bf16.mxu0 0
    %755 = vmatpush1.bf16.xpose.msra.mxu0 0
    %756 = vmatprep.subr.bf16.mxu0 0
    %757 = vmatpush1.bf16.xpose.msra.mxu0 0
    %758 = vmatprep.subr.bf16.mxu0 0
    %759 = vmatpush1.bf16.xpose.msra.mxu0 0
    %760 = vmatprep.subr.bf16.mxu0 0
    %761 = vmatpush1.bf16.xpose.msra.mxu0 0
    %762 = vmatprep.subr.bf16.mxu0 0
    %763 = vmatpush1.bf16.xpose.msra.mxu0 0
    %764 = vmatprep.subr.bf16.mxu0 0
    %765 = vmatpush1.bf16.xpose.msra.mxu0 0
    %766 = vmatprep.subr.bf16.mxu0 0
    %767 = vmatpush1.bf16.xpose.msra.mxu0 0
    %768 = vmatprep.subr.bf16.mxu0 0
    %769 = vmatpush1.bf16.xpose.msra.mxu0 0
    %770 = vmatprep.subr.bf16.mxu0 0
    %771 = vmatpush1.bf16.xpose.msra.mxu0 0
    %772 = vmatprep.subr.bf16.mxu0 0
    %773 = vmatpush1.bf16.xpose.msra.mxu0 0
    %774 = vmatprep.subr.bf16.mxu0 0
    %775 = vmatpush1.bf16.xpose.msra.mxu0 0
    %776 = vmatprep.subr.bf16.mxu0 0
    %777 = vmatpush1.bf16.xpose.msra.mxu0 0
    %778 = vmatprep.subr.bf16.mxu0 0
    %779 = vmatpush1.bf16.xpose.msra.mxu0 0
    %780 = vmatprep.mubr.bf16.mxu0 0
    %781 = vmatmul.mubr.bf16.gmra.mrb[0].mxu0 %v743
    %v782 = vpop.f32.mrb[0].mxu0
    %v783 = vadd.f32 0.0, %v782
    %v784 = vpop.f32.mrb[0].mxu0
    %v785 = vpop.f32.mrb[0].mxu0
    %v786 = vpop.f32.mrb[0].mxu0
    %787 = vdwg.mxu0
    %v788 = vsel %vm419, %v461, -inf
    %789 = vmax.xlane.f32.xlu0 %v788
    %v790 = vpop.xlane.xlu0 %789
    %v791 = vsel %vm419, %v507, -inf
    %792 = vmax.xlane.f32.xlu0 %v791
    %v793 = vpop.xlane.xlu0 %792
    %v794 = vsel %vm419, %v553, -inf
    %795 = vmax.xlane.f32.xlu0 %v794
    %v796 = vpop.xlane.xlu0 %795
    %v797 = vsel %vm419, %v599, -inf
    %798 = vmax.xlane.f32.xlu0 %v797
    %v799 = vpop.xlane.xlu0 %798
    %v800 = vsel %vm419, %v645, -inf
    %801 = vmax.xlane.f32.xlu0 %v800
    %v802 = vpop.xlane.xlu0 %801
    %v803 = vsel %vm419, %v691, -inf
    %804 = vmax.xlane.f32.xlu0 %v803
    %v805 = vpop.xlane.xlu0 %804
    %v806 = vsel %vm419, %v737, -inf
    %807 = vmax.xlane.f32.xlu0 %v806
    %v808 = vpop.xlane.xlu0 %807
    %v809 = vsel %vm419, %v783, -inf
    %810 = vmax.xlane.f32.xlu0 %v809
    %v811 = vpop.xlane.xlu0 %810
    %v812 = vsub.f32 %v461, %v790
    %v813 = vsub.f32 %v507, %v793
    %v814 = vsub.f32 %v553, %v796
    %v815 = vsub.f32 %v599, %v799
    %v816 = vsub.f32 %v645, %v802
    %v817 = vsub.f32 %v691, %v805
    %v818 = vsub.f32 %v737, %v808
    %v819 = vsub.f32 %v783, %v811
    %v820 = vmul.f32 %v812, 1.442695
    %v821 = vpow.pop %v820
    %v822 = vmul.f32 %v813, 1.442695
    %v823 = vpow.pop %v822
    %v824 = vmul.f32 %v814, 1.442695
    %v825 = vpow.pop %v824
    %v826 = vmul.f32 %v815, 1.442695
    %v827 = vpow.pop %v826
    %v828 = vmul.f32 %v816, 1.442695
    %v829 = vpow.pop %v828
    %v830 = vmul.f32 %v817, 1.442695
    %v831 = vpow.pop %v830
    %v832 = vmul.f32 %v818, 1.442695
    %v833 = vpow.pop %v832
    %v834 = vmul.f32 %v819, 1.442695
    %v835 = vpow.pop %v834
    %v836 = vsel %vm419, %v821, 0.0
    %837 = vadd.xlane.f32.xlu0 %v836
    %v838 = vpop.xlane.xlu0 %837
    %v839 = vsel %vm419, %v823, 0.0
    %840 = vadd.xlane.f32.xlu0 %v839
    %v841 = vpop.xlane.xlu0 %840
    %v842 = vsel %vm419, %v825, 0.0
    %843 = vadd.xlane.f32.xlu0 %v842
    %v844 = vpop.xlane.xlu0 %843
    %v845 = vsel %vm419, %v827, 0.0
    %846 = vadd.xlane.f32.xlu0 %v845
    %v847 = vpop.xlane.xlu0 %846
    %v848 = vsel %vm419, %v829, 0.0
    %849 = vadd.xlane.f32.xlu0 %v848
    %v850 = vpop.xlane.xlu0 %849
    %v851 = vsel %vm419, %v831, 0.0
    %852 = vadd.xlane.f32.xlu0 %v851
    %v853 = vpop.xlane.xlu0 %852
    %v854 = vsel %vm419, %v833, 0.0
    %855 = vadd.xlane.f32.xlu0 %v854
    %v856 = vpop.xlane.xlu0 %855
    %v857 = vsel %vm419, %v835, 0.0
    %858 = vadd.xlane.f32.xlu0 %v857
    %v859 = vpop.xlane.xlu0 %858
    %v860 = vrcp.pop %v838
    %v861 = vrcp.pop %v841
    %v862 = vrcp.pop %v844
    %v863 = vrcp.pop %v847
    %v864 = vrcp.pop %v850
    %v865 = vrcp.pop %v853
    %v866 = vrcp.pop %v856
    %v867 = vrcp.pop %v859
    %v868 = vmul.f32 %v821, %v860
    %v869 = vmul.f32 %v823, %v861
    %v870 = vmul.f32 %v825, %v862
    %v871 = vmul.f32 %v827, %v863
    %v872 = vmul.f32 %v829, %v864
    %v873 = vmul.f32 %v831, %v865
    %v874 = vmul.f32 %v833, %v866
    %v875 = vmul.f32 %v835, %v867
    %v876 = vpack.c.bf16 %v868, %v868
    %v877 = vpack.c.bf16 %v869, %v869
    %v878 = vpack.c.bf16 %v870, %v870
    %v879 = vpack.c.bf16 %v871, %v871
    %v880 = vpack.c.bf16 %v872, %v872
    %v881 = vpack.c.bf16 %v873, %v873
    %v882 = vpack.c.bf16 %v874, %v874
    %v883 = vpack.c.bf16 %v875, %v875
    %v885 = vsel %vm419, %v876, 0
    %vm887 = vcmask 1043456
    %v889 = vsel %vm887, %v411, 0
    %891 = vmatprep.subr.bf16.mxu0 0
    %892 = vmatpush1.bf16.msra.mxu0 %v889
    %893 = vmatprep.subr.bf16.mxu0 0
    %894 = vmatpush1.bf16.msra.mxu0 0
    %895 = vmatprep.subr.bf16.mxu0 0
    %896 = vmatpush1.bf16.msra.mxu0 0
    %897 = vmatprep.subr.bf16.mxu0 0
    %898 = vmatpush1.bf16.msra.mxu0 0
    %899 = vmatprep.subr.bf16.mxu0 0
    %900 = vmatpush1.bf16.msra.mxu0 0
    %901 = vmatprep.subr.bf16.mxu0 0
    %902 = vmatpush1.bf16.msra.mxu0 0
    %903 = vmatprep.subr.bf16.mxu0 0
    %904 = vmatpush1.bf16.msra.mxu0 0
    %905 = vmatprep.subr.bf16.mxu0 0
    %906 = vmatpush1.bf16.msra.mxu0 0
    %907 = vmatprep.subr.bf16.mxu0 0
    %908 = vmatpush1.bf16.msra.mxu0 0
    %909 = vmatprep.subr.bf16.mxu0 0
    %910 = vmatpush1.bf16.msra.mxu0 0
    %911 = vmatprep.subr.bf16.mxu0 0
    %912 = vmatpush1.bf16.msra.mxu0 0
    %913 = vmatprep.subr.bf16.mxu0 0
    %914 = vmatpush1.bf16.msra.mxu0 0
    %915 = vmatprep.subr.bf16.mxu0 0
    %916 = vmatpush1.bf16.msra.mxu0 0
    %917 = vmatprep.subr.bf16.mxu0 0
    %918 = vmatpush1.bf16.msra.mxu0 0
    %919 = vmatprep.subr.bf16.mxu0 0
    %920 = vmatpush1.bf16.msra.mxu0 0
    %921 = vmatprep.subr.bf16.mxu0 0
    %922 = vmatpush1.bf16.msra.mxu0 0
    %923 = vmatprep.mubr.bf16.mxu0 0
    %924 = vmatmul.mubr.bf16.gmra.mrb[0].mxu0 %v885
    %v925 = vpop.f32.mrb[0].mxu0
    %v926 = vadd.f32 0.0, %v925
    %v927 = vpop.f32.mrb[0].mxu0
    %v928 = vpop.f32.mrb[0].mxu0
    %v929 = vpop.f32.mrb[0].mxu0
    %930 = vdwg.mxu0
    %v932 = vsel %vm419, %v877, 0
    %v935 = vsel %vm887, %v412, 0
    %937 = vmatprep.subr.bf16.mxu0 0
    %938 = vmatpush1.bf16.msra.mxu0 %v935
    %939 = vmatprep.subr.bf16.mxu0 0
    %940 = vmatpush1.bf16.msra.mxu0 0
    %941 = vmatprep.subr.bf16.mxu0 0
    %942 = vmatpush1.bf16.msra.mxu0 0
    %943 = vmatprep.subr.bf16.mxu0 0
    %944 = vmatpush1.bf16.msra.mxu0 0
    %945 = vmatprep.subr.bf16.mxu0 0
    %946 = vmatpush1.bf16.msra.mxu0 0
    %947 = vmatprep.subr.bf16.mxu0 0
    %948 = vmatpush1.bf16.msra.mxu0 0
    %949 = vmatprep.subr.bf16.mxu0 0
    %950 = vmatpush1.bf16.msra.mxu0 0
    %951 = vmatprep.subr.bf16.mxu0 0
    %952 = vmatpush1.bf16.msra.mxu0 0
    %953 = vmatprep.subr.bf16.mxu0 0
    %954 = vmatpush1.bf16.msra.mxu0 0
    %955 = vmatprep.subr.bf16.mxu0 0
    %956 = vmatpush1.bf16.msra.mxu0 0
    %957 = vmatprep.subr.bf16.mxu0 0
    %958 = vmatpush1.bf16.msra.mxu0 0
    %959 = vmatprep.subr.bf16.mxu0 0
    %960 = vmatpush1.bf16.msra.mxu0 0
    %961 = vmatprep.subr.bf16.mxu0 0
    %962 = vmatpush1.bf16.msra.mxu0 0
    %963 = vmatprep.subr.bf16.mxu0 0
    %964 = vmatpush1.bf16.msra.mxu0 0
    %965 = vmatprep.subr.bf16.mxu0 0
    %966 = vmatpush1.bf16.msra.mxu0 0
    %967 = vmatprep.subr.bf16.mxu0 0
    %968 = vmatpush1.bf16.msra.mxu0 0
    %969 = vmatprep.mubr.bf16.mxu0 0
    %970 = vmatmul.mubr.bf16.gmra.mrb[0].mxu0 %v932
    %v971 = vpop.f32.mrb[0].mxu0
    %v972 = vadd.f32 0.0, %v971
    %v973 = vpop.f32.mrb[0].mxu0
    %v974 = vpop.f32.mrb[0].mxu0
    %v975 = vpop.f32.mrb[0].mxu0
    %976 = vdwg.mxu0
    %v978 = vsel %vm419, %v878, 0
    %v981 = vsel %vm887, %v413, 0
    %983 = vmatprep.subr.bf16.mxu0 0
    %984 = vmatpush1.bf16.msra.mxu0 %v981
    %985 = vmatprep.subr.bf16.mxu0 0
    %986 = vmatpush1.bf16.msra.mxu0 0
    %987 = vmatprep.subr.bf16.mxu0 0
    %988 = vmatpush1.bf16.msra.mxu0 0
    %989 = vmatprep.subr.bf16.mxu0 0
    %990 = vmatpush1.bf16.msra.mxu0 0
    %991 = vmatprep.subr.bf16.mxu0 0
    %992 = vmatpush1.bf16.msra.mxu0 0
    %993 = vmatprep.subr.bf16.mxu0 0
    %994 = vmatpush1.bf16.msra.mxu0 0
    %995 = vmatprep.subr.bf16.mxu0 0
    %996 = vmatpush1.bf16.msra.mxu0 0
    %997 = vmatprep.subr.bf16.mxu0 0
    %998 = vmatpush1.bf16.msra.mxu0 0
    %999 = vmatprep.subr.bf16.mxu0 0
    %1000 = vmatpush1.bf16.msra.mxu0 0
    %1001 = vmatprep.subr.bf16.mxu0 0
    %1002 = vmatpush1.bf16.msra.mxu0 0
    %1003 = vmatprep.subr.bf16.mxu0 0
    %1004 = vmatpush1.bf16.msra.mxu0 0
    %1005 = vmatprep.subr.bf16.mxu0 0
    %1006 = vmatpush1.bf16.msra.mxu0 0
    %1007 = vmatprep.subr.bf16.mxu0 0
    %1008 = vmatpush1.bf16.msra.mxu0 0
    %1009 = vmatprep.subr.bf16.mxu0 0
    %1010 = vmatpush1.bf16.msra.mxu0 0
    %1011 = vmatprep.subr.bf16.mxu0 0
    %1012 = vmatpush1.bf16.msra.mxu0 0
    %1013 = vmatprep.subr.bf16.mxu0 0
    %1014 = vmatpush1.bf16.msra.mxu0 0
    %1015 = vmatprep.mubr.bf16.mxu0 0
    %1016 = vmatmul.mubr.bf16.gmra.mrb[0].mxu0 %v978
    %v1017 = vpop.f32.mrb[0].mxu0
    %v1018 = vadd.f32 0.0, %v1017
    %v1019 = vpop.f32.mrb[0].mxu0
    %v1020 = vpop.f32.mrb[0].mxu0
    %v1021 = vpop.f32.mrb[0].mxu0
    %1022 = vdwg.mxu0
    %v1024 = vsel %vm419, %v879, 0
    %v1027 = vsel %vm887, %v414, 0
    %1029 = vmatprep.subr.bf16.mxu0 0
    %1030 = vmatpush1.bf16.msra.mxu0 %v1027
    %1031 = vmatprep.subr.bf16.mxu0 0
    %1032 = vmatpush1.bf16.msra.mxu0 0
    %1033 = vmatprep.subr.bf16.mxu0 0
    %1034 = vmatpush1.bf16.msra.mxu0 0
    %1035 = vmatprep.subr.bf16.mxu0 0
    %1036 = vmatpush1.bf16.msra.mxu0 0
    %1037 = vmatprep.subr.bf16.mxu0 0
    %1038 = vmatpush1.bf16.msra.mxu0 0
    %1039 = vmatprep.subr.bf16.mxu0 0
    %1040 = vmatpush1.bf16.msra.mxu0 0
    %1041 = vmatprep.subr.bf16.mxu0 0
    %1042 = vmatpush1.bf16.msra.mxu0 0
    %1043 = vmatprep.subr.bf16.mxu0 0
    %1044 = vmatpush1.bf16.msra.mxu0 0
    %1045 = vmatprep.subr.bf16.mxu0 0
    %1046 = vmatpush1.bf16.msra.mxu0 0
    %1047 = vmatprep.subr.bf16.mxu0 0
    %1048 = vmatpush1.bf16.msra.mxu0 0
    %1049 = vmatprep.subr.bf16.mxu0 0
    %1050 = vmatpush1.bf16.msra.mxu0 0
    %1051 = vmatprep.subr.bf16.mxu0 0
    %1052 = vmatpush1.bf16.msra.mxu0 0
    %1053 = vmatprep.subr.bf16.mxu0 0
    %1054 = vmatpush1.bf16.msra.mxu0 0
    %1055 = vmatprep.subr.bf16.mxu0 0
    %1056 = vmatpush1.bf16.msra.mxu0 0
    %1057 = vmatprep.subr.bf16.mxu0 0
    %1058 = vmatpush1.bf16.msra.mxu0 0
    %1059 = vmatprep.subr.bf16.mxu0 0
    %1060 = vmatpush1.bf16.msra.mxu0 0
    %1061 = vmatprep.mubr.bf16.mxu0 0
    %1062 = vmatmul.mubr.bf16.gmra.mrb[0].mxu0 %v1024
    %v1063 = vpop.f32.mrb[0].mxu0
    %v1064 = vadd.f32 0.0, %v1063
    %v1065 = vpop.f32.mrb[0].mxu0
    %v1066 = vpop.f32.mrb[0].mxu0
    %v1067 = vpop.f32.mrb[0].mxu0
    %1068 = vdwg.mxu0
    %v1070 = vsel %vm419, %v880, 0
    %v1073 = vsel %vm887, %v415, 0
    %1075 = vmatprep.subr.bf16.mxu0 0
    %1076 = vmatpush1.bf16.msra.mxu0 %v1073
    %1077 = vmatprep.subr.bf16.mxu0 0
    %1078 = vmatpush1.bf16.msra.mxu0 0
    %1079 = vmatprep.subr.bf16.mxu0 0
    %1080 = vmatpush1.bf16.msra.mxu0 0
    %1081 = vmatprep.subr.bf16.mxu0 0
    %1082 = vmatpush1.bf16.msra.mxu0 0
    %1083 = vmatprep.subr.bf16.mxu0 0
    %1084 = vmatpush1.bf16.msra.mxu0 0
    %1085 = vmatprep.subr.bf16.mxu0 0
    %1086 = vmatpush1.bf16.msra.mxu0 0
    %1087 = vmatprep.subr.bf16.mxu0 0
    %1088 = vmatpush1.bf16.msra.mxu0 0
    %1089 = vmatprep.subr.bf16.mxu0 0
    %1090 = vmatpush1.bf16.msra.mxu0 0
    %1091 = vmatprep.subr.bf16.mxu0 0
    %1092 = vmatpush1.bf16.msra.mxu0 0
    %1093 = vmatprep.subr.bf16.mxu0 0
    %1094 = vmatpush1.bf16.msra.mxu0 0
    %1095 = vmatprep.subr.bf16.mxu0 0
    %1096 = vmatpush1.bf16.msra.mxu0 0
    %1097 = vmatprep.subr.bf16.mxu0 0
    %1098 = vmatpush1.bf16.msra.mxu0 0
    %1099 = vmatprep.subr.bf16.mxu0 0
    %1100 = vmatpush1.bf16.msra.mxu0 0
    %1101 = vmatprep.subr.bf16.mxu0 0
    %1102 = vmatpush1.bf16.msra.mxu0 0
    %1103 = vmatprep.subr.bf16.mxu0 0
    %1104 = vmatpush1.bf16.msra.mxu0 0
    %1105 = vmatprep.subr.bf16.mxu0 0
    %1106 = vmatpush1.bf16.msra.mxu0 0
    %1107 = vmatprep.mubr.bf16.mxu0 0
    %1108 = vmatmul.mubr.bf16.gmra.mrb[0].mxu0 %v1070
    %v1109 = vpop.f32.mrb[0].mxu0
    %v1110 = vadd.f32 0.0, %v1109
    %v1111 = vpop.f32.mrb[0].mxu0
    %v1112 = vpop.f32.mrb[0].mxu0
    %v1113 = vpop.f32.mrb[0].mxu0
    %1114 = vdwg.mxu0
    %v1116 = vsel %vm419, %v881, 0
    %v1119 = vsel %vm887, %v416, 0
    %1121 = vmatprep.subr.bf16.mxu0 0
    %1122 = vmatpush1.bf16.msra.mxu0 %v1119
    %1123 = vmatprep.subr.bf16.mxu0 0
    %1124 = vmatpush1.bf16.msra.mxu0 0
    %1125 = vmatprep.subr.bf16.mxu0 0
    %1126 = vmatpush1.bf16.msra.mxu0 0
    %1127 = vmatprep.subr.bf16.mxu0 0
    %1128 = vmatpush1.bf16.msra.mxu0 0
    %1129 = vmatprep.subr.bf16.mxu0 0
    %1130 = vmatpush1.bf16.msra.mxu0 0
    %1131 = vmatprep.subr.bf16.mxu0 0
    %1132 = vmatpush1.bf16.msra.mxu0 0
    %1133 = vmatprep.subr.bf16.mxu0 0
    %1134 = vmatpush1.bf16.msra.mxu0 0
    %1135 = vmatprep.subr.bf16.mxu0 0
    %1136 = vmatpush1.bf16.msra.mxu0 0
    %1137 = vmatprep.subr.bf16.mxu0 0
    %1138 = vmatpush1.bf16.msra.mxu0 0
    %1139 = vmatprep.subr.bf16.mxu0 0
    %1140 = vmatpush1.bf16.msra.mxu0 0
    %1141 = vmatprep.subr.bf16.mxu0 0
    %1142 = vmatpush1.bf16.msra.mxu0 0
    %1143 = vmatprep.subr.bf16.mxu0 0
    %1144 = vmatpush1.bf16.msra.mxu0 0
    %1145 = vmatprep.subr.bf16.mxu0 0
    %1146 = vmatpush1.bf16.msra.mxu0 0
    %1147 = vmatprep.subr.bf16.mxu0 0
    %1148 = vmatpush1.bf16.msra.mxu0 0
    %1149 = vmatprep.subr.bf16.mxu0 0
    %1150 = vmatpush1.bf16.msra.mxu0 0
    %1151 = vmatprep.subr.bf16.mxu0 0
    %1152 = vmatpush1.bf16.msra.mxu0 0
    %1153 = vmatprep.mubr.bf16.mxu0 0
    %1154 = vmatmul.mubr.bf16.gmra.mrb[0].mxu0 %v1116
    %v1155 = vpop.f32.mrb[0].mxu0
    %v1156 = vadd.f32 0.0, %v1155
    %v1157 = vpop.f32.mrb[0].mxu0
    %v1158 = vpop.f32.mrb[0].mxu0
    %v1159 = vpop.f32.mrb[0].mxu0
    %1160 = vdwg.mxu0
    %v1162 = vsel %vm419, %v882, 0
    %v1165 = vsel %vm887, %v417, 0
    %1167 = vmatprep.subr.bf16.mxu0 0
    %1168 = vmatpush1.bf16.msra.mxu0 %v1165
    %1169 = vmatprep.subr.bf16.mxu0 0
    %1170 = vmatpush1.bf16.msra.mxu0 0
    %1171 = vmatprep.subr.bf16.mxu0 0
    %1172 = vmatpush1.bf16.msra.mxu0 0
    %1173 = vmatprep.subr.bf16.mxu0 0
    %1174 = vmatpush1.bf16.msra.mxu0 0
    %1175 = vmatprep.subr.bf16.mxu0 0
    %1176 = vmatpush1.bf16.msra.mxu0 0
    %1177 = vmatprep.subr.bf16.mxu0 0
    %1178 = vmatpush1.bf16.msra.mxu0 0
    %1179 = vmatprep.subr.bf16.mxu0 0
    %1180 = vmatpush1.bf16.msra.mxu0 0
    %1181 = vmatprep.subr.bf16.mxu0 0
    %1182 = vmatpush1.bf16.msra.mxu0 0
    %1183 = vmatprep.subr.bf16.mxu0 0
    %1184 = vmatpush1.bf16.msra.mxu0 0
    %1185 = vmatprep.subr.bf16.mxu0 0
    %1186 = vmatpush1.bf16.msra.mxu0 0
    %1187 = vmatprep.subr.bf16.mxu0 0
    %1188 = vmatpush1.bf16.msra.mxu0 0
    %1189 = vmatprep.subr.bf16.mxu0 0
    %1190 = vmatpush1.bf16.msra.mxu0 0
    %1191 = vmatprep.subr.bf16.mxu0 0
    %1192 = vmatpush1.bf16.msra.mxu0 0
    %1193 = vmatprep.subr.bf16.mxu0 0
    %1194 = vmatpush1.bf16.msra.mxu0 0
    %1195 = vmatprep.subr.bf16.mxu0 0
    %1196 = vmatpush1.bf16.msra.mxu0 0
    %1197 = vmatprep.subr.bf16.mxu0 0
    %1198 = vmatpush1.bf16.msra.mxu0 0
    %1199 = vmatprep.mubr.bf16.mxu0 0
    %1200 = vmatmul.mubr.bf16.gmra.mrb[0].mxu0 %v1162
    %v1201 = vpop.f32.mrb[0].mxu0
    %v1202 = vadd.f32 0.0, %v1201
    %v1203 = vpop.f32.mrb[0].mxu0
    %v1204 = vpop.f32.mrb[0].mxu0
    %v1205 = vpop.f32.mrb[0].mxu0
    %1206 = vdwg.mxu0
    %v1208 = vsel %vm419, %v883, 0
    %v1211 = vsel %vm887, %v418, 0
    %1213 = vmatprep.subr.bf16.mxu0 0
    %1214 = vmatpush1.bf16.msra.mxu0 %v1211
    %1215 = vmatprep.subr.bf16.mxu0 0
    %1216 = vmatpush1.bf16.msra.mxu0 0
    %1217 = vmatprep.subr.bf16.mxu0 0
    %1218 = vmatpush1.bf16.msra.mxu0 0
    %1219 = vmatprep.subr.bf16.mxu0 0
    %1220 = vmatpush1.bf16.msra.mxu0 0
    %1221 = vmatprep.subr.bf16.mxu0 0
    %1222 = vmatpush1.bf16.msra.mxu0 0
    %1223 = vmatprep.subr.bf16.mxu0 0
    %1224 = vmatpush1.bf16.msra.mxu0 0
    %1225 = vmatprep.subr.bf16.mxu0 0
    %1226 = vmatpush1.bf16.msra.mxu0 0
    %1227 = vmatprep.subr.bf16.mxu0 0
    %1228 = vmatpush1.bf16.msra.mxu0 0
    %1229 = vmatprep.subr.bf16.mxu0 0
    %1230 = vmatpush1.bf16.msra.mxu0 0
    %1231 = vmatprep.subr.bf16.mxu0 0
    %1232 = vmatpush1.bf16.msra.mxu0 0
    %1233 = vmatprep.subr.bf16.mxu0 0
    %1234 = vmatpush1.bf16.msra.mxu0 0
    %1235 = vmatprep.subr.bf16.mxu0 0
    %1236 = vmatpush1.bf16.msra.mxu0 0
    %1237 = vmatprep.subr.bf16.mxu0 0
    %1238 = vmatpush1.bf16.msra.mxu0 0
    %1239 = vmatprep.subr.bf16.mxu0 0
    %1240 = vmatpush1.bf16.msra.mxu0 0
    %1241 = vmatprep.subr.bf16.mxu0 0
    %1242 = vmatpush1.bf16.msra.mxu0 0
    %1243 = vmatprep.subr.bf16.mxu0 0
    %1244 = vmatpush1.bf16.msra.mxu0 0
    %1245 = vmatprep.mubr.bf16.mxu0 0
    %1246 = vmatmul.mubr.bf16.gmra.mrb[0].mxu0 %v1208
    %v1247 = vpop.f32.mrb[0].mxu0
    %v1248 = vadd.f32 0.0, %v1247
    %v1249 = vpop.f32.mrb[0].mxu0
    %v1250 = vpop.f32.mrb[0].mxu0
    %v1251 = vpop.f32.mrb[0].mxu0
    %1252 = vdwg.mxu0
    %1255 = vrot.lane.b32.xlu0 %v1018, 8
    %v1256 = vpop.permute.xlu0 %1255
    %1257 = vrot.lane.b32.xlu0 %v1064, 8
    %v1258 = vpop.permute.xlu0 %1257
    %1263 = vrot.lane.b32.xlu0 %v1110, 16
    %v1264 = vpop.permute.xlu0 %1263
    %1265 = vrot.lane.b32.xlu0 %v1156, 16
    %v1266 = vpop.permute.xlu0 %1265
    %1271 = vrot.lane.b32.xlu0 %v1202, 24
    %v1272 = vpop.permute.xlu0 %1271
    %1273 = vrot.lane.b32.xlu0 %v1248, 24
    %v1274 = vpop.permute.xlu0 %1273
    %v1277 = vsel %vm419, %v926, %v1256
    %v1278 = vsel %vm419, %v972, %v1258
    %vm1279 = vcmask 130048
    %v1280 = vsel %vm1279, %v1277, %v1264
    %v1281 = vsel %vm1279, %v1278, %v1266
    %vm1282 = vcmask 195584
    %v1283 = vsel %vm1282, %v1280, %v1272
    %v1284 = vsel %vm1282, %v1281, %v1274
    %v1285 = vpack.c.bf16 %v1284, %v1283
    %v1286 = vld [vmem:[#allocation7] sm:$0xf]
    %v1287 = vld [vmem:[#allocation7 + $0x4] sm:$0xf]
    %v1288 = vld [vmem:[#allocation7 + $0x8] sm:$0xf]
    %v1289 = vld [vmem:[#allocation7 + $0xc] sm:$0xf]
    %v1290 = vld [vmem:[%s4] sm:$0x1]
    %v1292 = vlaneseq
    %v1293 = vshrl.u32 %v1292, 7
    %v1294 = vsub.s32 0, %v1293
    %v1295 = vrot.slane %v1290, %v1294
    %v1301 = vunpack.c.l.b16 %v1286
    %v1302 = vunpack.c.l.b16 %v1287
    %v1303 = vunpack.c.l.b16 %v1288
    %v1304 = vunpack.c.l.b16 %v1289
    %v1305 = vpack.c.b16 %v1302, %v1301
    %v1306 = vpack.c.b16 %v1304, %v1303
    %vm1309 = vcmask 261120
    %v1311 = vsel %vm1309, %v1285, 0
    %1313 = vmatprep.subr.bf16.mxu0 0
    %1314 = vmatpush1.bf16.msra.mxu0 %v1305
    %1315 = vmatprep.subr.bf16.mxu0 0
    %1316 = vmatpush1.bf16.msra.mxu0 %v1306
    %1317 = vmatprep.subr.bf16.mxu0 0
    %1318 = vmatpush1.bf16.msra.mxu0 0
    %1319 = vmatprep.subr.bf16.mxu0 0
    %1320 = vmatpush1.bf16.msra.mxu0 0
    %1321 = vmatprep.subr.bf16.mxu0 0
    %1322 = vmatpush1.bf16.msra.mxu0 0
    %1323 = vmatprep.subr.bf16.mxu0 0
    %1324 = vmatpush1.bf16.msra.mxu0 0
    %1325 = vmatprep.subr.bf16.mxu0 0
    %1326 = vmatpush1.bf16.msra.mxu0 0
    %1327 = vmatprep.subr.bf16.mxu0 0
    %1328 = vmatpush1.bf16.msra.mxu0 0
    %1329 = vmatprep.subr.bf16.mxu0 0
    %1330 = vmatpush1.bf16.msra.mxu0 0
    %1331 = vmatprep.subr.bf16.mxu0 0
    %1332 = vmatpush1.bf16.msra.mxu0 0
    %1333 = vmatprep.subr.bf16.mxu0 0
    %1334 = vmatpush1.bf16.msra.mxu0 0
    %1335 = vmatprep.subr.bf16.mxu0 0
    %1336 = vmatpush1.bf16.msra.mxu0 0
    %1337 = vmatprep.subr.bf16.mxu0 0
    %1338 = vmatpush1.bf16.msra.mxu0 0
    %1339 = vmatprep.subr.bf16.mxu0 0
    %1340 = vmatpush1.bf16.msra.mxu0 0
    %1341 = vmatprep.subr.bf16.mxu0 0
    %1342 = vmatpush1.bf16.msra.mxu0 0
    %1343 = vmatprep.subr.bf16.mxu0 0
    %1344 = vmatpush1.bf16.msra.mxu0 0
    %1345 = vmatprep.mubr.bf16.mxu0 0
    %1346 = vmatmul.mubr.bf16.gmra.mrb[0].mxu0 %v1311
    %v1347 = vpop.f32.mrb[0].mxu0
    %v1348 = vadd.f32 %v1295, %v1347
    %v1349 = vpop.f32.mrb[0].mxu0
    %v1350 = vpop.f32.mrb[0].mxu0
    %v1351 = vadd.f32 %v1295, %v1350
    %v1352 = vpop.f32.mrb[0].mxu0
    %1353 = vdwg.mxu0
    %v1354 = vadd.f32 %v1348, %v63
    %v1355 = vadd.f32 %v1351, %v64
    %v1356 = vadd.f32 %v1354, %v1355
    %p1357 = scmp.eq.s32.totalorder 0, 0
    // Predicated region
    $region34: #{tpu_custom_call.1} parent=1 // pred_check
      %p1358 = pneg %p1357
    $region35: #{tpu_custom_call.1} parent=1 // pred_check_branch
      %1360 = sbr.rel (%p1358) target = $region37
    $region36: #{tpu_custom_call.1} parent=1 // pred_region
      %1361 = vst [vmem:[#allocation8] sm:$0xff] 0.0
    $region37: #{tpu_custom_call.1} parent=1 // pred_fallthru
      _
    %v1362 = vld [vmem:[#allocation8] sm:$0xff]
    %v1363 = vadd.f32 %v1362, %v1356
    %1364 = vst [vmem:[#allocation8] sm:$0xff] %v1363
    // Predicated region
    $region38: #{tpu_custom_call.1} parent=1 // pred_check
      _
    $region39: #{tpu_custom_call.1} parent=1 // pred_check_branch
      %1366 = sbr.rel (0) target = $region41
    $region40: #{tpu_custom_call.1} parent=1 // pred_region
      %s1368 = ssub.s32 128, 128
      %1369 = vsyncadd [#allocation4], %s1368
      %s1371 = sshll.u32 [#allocation8], 4
      %s1372 = int_to_ptr.vmem [resolvable:$true] %s1371
      %1374 = dma.vmem_to_hbm [thread:$0]  %s1372, 128, %s5, [#allocation4]
    $region41: #{tpu_custom_call.1} parent=1 // pred_fallthru
      _
    // Predicated region
    $region42: #{tpu_custom_call.1} parent=1 // pred_check
      _
    $region43: #{tpu_custom_call.1} parent=1 // pred_check_branch
      %1376 = sbr.rel (0) target = $region45
    $region44: #{tpu_custom_call.1} parent=1 // pred_region
      %1377 = dma.done [#allocation4], 128
    $region45: #{tpu_custom_call.1} parent=1 // pred_fallthru
      _
    %1378 = vsyncpa [#allocation3], 1
    %1379 = vsyncpa [#allocation6], 1
    %1380 = vsyncpa [#allocation4], 1

</llo_original>
